<compile_context>
chip_gen: v6e
topology: v6e:2x2x1
jax: 0.10.0
libtpu: 0.0.40
codegen_flags: <defaults>
</compile_context>

<pallas_src>
import functools

import jax
import jax.numpy as jnp
from jax.experimental import pallas as pl
from jax.experimental.pallas import tpu as pltpu

LANE = 128  # channel lane width used for all in-kernel activations


def _round_up(x, m):
    return ((x + m - 1) // m) * m


# ---------------------------------------------------------------------------
# Fused Pallas kernel: whole causal-conv stack + residual for BB batch rows.
# ---------------------------------------------------------------------------
def _tcn_stack_kernel(x_ref, w_ref, shift_ref, out_ref, hbuf, *,
                      dilations, K, Tp, pad_max, c_in):
    """x_ref:     (BB, Tp, c_in)       unpadded-channel input block (f32)
       w_ref:     (L, K*C, C)          im2col weights, BN scale folded (bf16)
       shift_ref: (L, 1, C)            folded bias/BN shift (f32, 0 in pad lanes)
       out_ref:   (BB, Tp, C)          lane-dense output block (f32)
       hbuf:      (BB, pad_max+Tp, C)  VMEM scratch: causal margin + activation
    """
    BB = x_ref.shape[0]
    C = out_ref.shape[2]
    M = BB * Tp

    def load_x_padded():
        # Zero-extend the real channels to the full 128-lane layout (in VMEM
        # only -- HBM traffic stays at the real channel count).
        x = x_ref[...].astype(jnp.float32)
        if c_in == C:
            return x
        z = jnp.zeros((BB, Tp, C - c_in), jnp.float32)
        return jnp.concatenate([x, z], axis=-1)

    # Causal zero margin.  Re-zeroed every grid step: a program_id==0 guard is
    # unsafe under v7x megacore "parallel" sharding (per-core scratch), and
    # the cost (pad_max rows of vst) is negligible.
    hbuf[:, 0:pad_max, :] = jnp.zeros((BB, pad_max, C), jnp.float32)
    hbuf[:, pad_max:pad_max + Tp, :] = load_x_padded()

    for i, d in enumerate(dilations):            # static unroll over L layers
        pad_i = (K - 1) * d
        base = pad_max - pad_i
        # im2col: K dilated taps (bf16) concatenated on the lane axis, then
        # flattened to (BB*Tp, K*C) for one deep MXU matmul per layer.
        taps = [hbuf[:, base + j * d: base + j * d + Tp, :].astype(jnp.bfloat16)
                for j in range(K)]
        cols = jnp.concatenate(taps, axis=-1).reshape(M, K * C)    # bf16
        acc = jnp.dot(cols, w_ref[i], preferred_element_type=jnp.float32)
        y = jnp.maximum(acc + shift_ref[i], 0.0)                   # (M, C) f32
        hbuf[:, pad_max:pad_max + Tp, :] = y.reshape(BB, Tp, C)

    # Residual: re-read the resident input block (cheap, already in VMEM)
    # instead of keeping it live across the unrolled layer loop.
    out_ref[...] = hbuf[:, pad_max:pad_max + Tp, :] + load_x_padded()


# ---------------------------------------------------------------------------
# Forward wrapper: one pallas_call for the whole network.
# ---------------------------------------------------------------------------
def residual_tcn_forward(x_nct, arrays, static, batch_block=8):
    B, C_in, T = x_nct.shape
    w, shift = arrays["w"], arrays["shift"]
    L, KC, C_pad = w.shape
    K, pad_max, dilations = static["K"], static["pad_max"], static["dilations"]

    # Single layout fixup for the whole forward: NCT -> NTC.  T is rounded up
    # (trailing zero rows are discarded; the causal conv never looks forward,
    # so rows < T are unaffected).  Channels are NOT padded in HBM.
    Tp = _round_up(max(T, 16), 16)
    x_ntc = jnp.transpose(x_nct, (0, 2, 1)).astype(jnp.float32)

    # Batch folding: fill the MXU with M = bb*Tp rows while keeping >= 2 grid
    # steps so both v7x TensorCores are used ("parallel" axis).
    bb = max(1, min(batch_block, pl.cdiv(B, 2)))
    B_pad = _round_up(B, bb)
    x_ntc = jnp.pad(x_ntc, ((0, B_pad - B), (0, Tp - T), (0, 0)))

    # Explicit VMEM budget: hbuf + double-buffered I/O blocks + constants.
    hbuf_bytes = bb * (pad_max + Tp) * C_pad * 4
    io_bytes = 2 * bb * Tp * (C_in + C_pad) * 4
    const_bytes = 2 * (int(w.size) * 2 + int(shift.size) * 4)
    vmem_limit = int(min(max(2 * (hbuf_bytes + io_bytes + const_bytes),
                             32 * 1024 * 1024), 64 * 1024 * 1024))

    kernel = functools.partial(_tcn_stack_kernel, dilations=dilations, K=K,
                               Tp=Tp, pad_max=pad_max, c_in=C_in)
    out = pl.pallas_call(
        kernel,
        out_shape=jax.ShapeDtypeStruct((B_pad, Tp, C_pad), jnp.float32),
        grid=(B_pad // bb,),
        in_specs=[
            pl.BlockSpec((bb, Tp, C_in), lambda b: (b, 0, 0)),
            pl.BlockSpec((L, KC, C_pad), lambda b: (0, 0, 0)),
            pl.BlockSpec((L, 1, C_pad), lambda b: (0, 0, 0)),
        ],
        out_specs=pl.BlockSpec((bb, Tp, C_pad), lambda b: (b, 0, 0)),
        scratch_shapes=[pltpu.VMEM((bb, pad_max + Tp, C_pad), jnp.float32)],
        compiler_params=pltpu.CompilerParams(
            dimension_semantics=("parallel",),
            vmem_limit_bytes=vmem_limit),
    )(x_ntc, w, shift)

    return jnp.transpose(out[:B, :T, :C_in], (0, 2, 1))


# ---------------------------------------------------------------------------
# One-time parameter prep (hoisted out of the forward path)
# ---------------------------------------------------------------------------
def prepare_fused_params(params, c_pad=LANE):
    """Fold BN scale into the conv weights, zero-pad channels to 128 lanes,
    im2col-reshape + stack the weights (bf16), stack shifts (f32).  Asserts
    the pad-lane invariant (zero padded weight rows/cols + zero padded shift
    lanes) that keeps padded lanes exactly zero through every ReLU."""
    K = int(params[0]["w"].shape[0])
    dilations = tuple(int(p["dilation"]) for p in params)
    pad_max = _round_up(max((K - 1) * d for d in dilations), 8)
    ws, shifts = [], []
    for p in params:
        _, ci, co = p["w"].shape
        w_scaled = (p["w"].astype(jnp.float32)
                    * p["scale"].astype(jnp.float32)[None, None, :])
        wpad = jnp.zeros((K, c_pad, c_pad), jnp.float32
                         ).at[:, :ci, :co].set(w_scaled)
        sh = jnp.zeros((c_pad,), jnp.float32
                       ).at[:co].set(p["shift"].astype(jnp.float32))
        # Pad-lane invariant (review correctness concern).
        assert bool(jnp.all(wpad[:, ci:, :] == 0.0))
        assert bool(jnp.all(wpad[:, :, co:] == 0.0))
        assert bool(jnp.all(sh[co:] == 0.0))
        ws.append(wpad.reshape(K * c_pad, c_pad))     # tap-major rows
        shifts.append(sh)
    arrays = dict(w=jnp.stack(ws).astype(jnp.bfloat16),   # (L, K*C, C) bf16
                  shift=jnp.stack(shifts)[:, None, :])    # (L, 1, C) f32
    static = dict(K=K, dilations=dilations, pad_max=pad_max)
    return arrays, static


# ---------------------------------------------------------------------------
# Deterministic parameter init (matches the PyTorch module's shapes)
# ---------------------------------------------------------------------------
def init_params(key, n_inputs, n_outputs, kernel_size, n_blocks):
    # channel / dilation schedule of ResidualTCN.__init__
    dims = []
    ni, no = n_inputs, n_outputs
    for b in range(n_blocks):
        dims.append((ni, no, 2 ** b))
        ni = no
    dims.append((no, n_inputs, 2 ** (n_blocks - 1)))

    eps = 1e-5
    params = []
    for (ci, co, d) in dims:
        key, k1, k2, k3, k4, k5, k6 = jax.random.split(key, 7)
        w_pt = 0.2 * jax.random.normal(k1, (co, ci, kernel_size), jnp.float32)
        bias = 0.1 * jax.random.normal(k2, (co,), jnp.float32)
        gamma = 1.0 + 0.1 * jax.random.normal(k3, (co,), jnp.float32)
        beta = 0.1 * jax.random.normal(k4, (co,), jnp.float32)
        rmean = 0.1 * jax.random.normal(k5, (co,), jnp.float32)
        rvar = 1.0 + 0.1 * jax.random.uniform(k6, (co,), jnp.float32)
        # Eval-mode BN folded with the conv bias into scale/shift.
        scale = gamma / jnp.sqrt(rvar + eps)
        shift = scale * bias + beta - rmean * scale
        w = jnp.transpose(w_pt, (2, 1, 0))  # (K, C_in, C_out)
        params.append(dict(w=w, scale=scale, shift=shift, dilation=int(d)))
    return params


# ---------------------------------------------------------------------------
# Pure-JAX reference: same eval-mode semantics and the same bf16-operand /
# f32-accumulate matmul rounding as the kernel.
# ---------------------------------------------------------------------------
def _ref_forward(x_nct, params):
    x_ntc = jnp.transpose(x_nct, (0, 2, 1)).astype(jnp.float32)
    h = x_ntc
    for p in params:
        w = (p["w"].astype(jnp.float32) * p["scale"][None, None, :]
             ).astype(jnp.bfloat16).astype(jnp.float32)
        K = w.shape[0]
        d = int(p["dilation"])
        pad = (K - 1) * d
        T = h.shape[1]
        hp = jnp.pad(h, ((0, 0), (pad, 0), (0, 0))
                     ).astype(jnp.bfloat16).astype(jnp.float32)
        acc = sum(jnp.einsum("btc,cd->btd", hp[:, j * d:j * d + T, :], w[j])
                  for j in range(K))
        h = jnp.maximum(acc + p["shift"][None, None, :], 0.0)
    return jnp.transpose(h + x_ntc, (0, 2, 1))


# ---------------------------------------------------------------------------
if __name__ == "__main__":
    key = jax.random.PRNGKey(0)
    k_params, k_x = jax.random.split(key)

    B, n_inputs, n_outputs, kernel_size, T = 8, 8, 16, 3, 16
    n_blocks = 5

    params = init_params(k_params, n_inputs, n_outputs, kernel_size, n_blocks)
    arrays, static = prepare_fused_params(params)
    x = jax.random.normal(k_x, (B, n_inputs, T), jnp.float32)  # PyTorch NCT

    out = residual_tcn_forward(x, arrays, static)
    out = jax.block_until_ready(out)

    ref = _ref_forward(x, params)
    assert out.shape == (B, n_inputs, T)
    max_err = float(jnp.max(jnp.abs(out - ref)))
    assert jnp.allclose(out, ref, atol=2e-2, rtol=2e-2), \
        f"mismatch vs reference (max abs err {max_err})"

    # TODO(synk): train-mode Dropout / BatchNorm batch statistics and the
    # optional Attention branch (attention=True) are not modeled; the kernel
    # implements the default eval-mode forward only.
    print("KERNEL_OK")
</pallas_src>

<mosaic_0001>
module attributes {stable_mosaic.version = 11 : i64} {
  func.func @_tcn_stack_kernel(%arg0: i32, %arg1: memref<4x16x8xf32, #tpu.memory_space<vmem>>, %arg2: memref<6x384x128xbf16, #tpu.memory_space<vmem>>, %arg3: memref<6x1x128xf32, #tpu.memory_space<vmem>>, %arg4: memref<4x16x128xf32, #tpu.memory_space<vmem>>, %arg5: memref<4x48x128xf32, #tpu.memory_space<vmem>>) attributes {dimension_semantics = [#tpu.dimension_semantics<parallel>], iteration_bounds = array<i64: 2>, scalar_prefetch = 0 : i64, scratch_operands = 1 : i64, tpu.core_type = #tpu.core_type<tc>, window_params = [{transform_indices = @transform_0, window_bounds = array<i64: 4, 16, 8>}, {pipeline_mode = #tpu.pipeline_mode<synchronous>, transform_indices = @transform_1, window_bounds = array<i64: 6, 384, 128>}, {pipeline_mode = #tpu.pipeline_mode<synchronous>, transform_indices = @transform_2, window_bounds = array<i64: 6, 1, 128>}, {transform_indices = @transform_3, window_bounds = array<i64: 4, 16, 128>}]} {
    %cst = arith.constant 0.000000e+00 : f32
    %0 = vector.broadcast %cst : f32 to vector<4x32x128xf32>
    %c0 = arith.constant 0 : index
    %c0_0 = arith.constant 0 : index
    %c0_1 = arith.constant 0 : index
    %1 = vector.load %arg5[%c0, %c0_0, %c0_1] : memref<4x48x128xf32, #tpu.memory_space<vmem>>, vector<4x32x128xf32>
    tpu.vector_store %arg5[%c0, %c0_0, %c0_1], %0 {strides = array<i32>} : memref<4x48x128xf32, #tpu.memory_space<vmem>>, vector<4x32x128xf32>,
    %c0_2 = arith.constant 0 : index
    %c0_3 = arith.constant 0 : index
    %c0_4 = arith.constant 0 : index
    %2 = vector.load %arg1[%c0_2, %c0_3, %c0_4] : memref<4x16x8xf32, #tpu.memory_space<vmem>>, vector<4x16x8xf32>
    %cst_5 = arith.constant 0.000000e+00 : f32
    %3 = vector.broadcast %cst_5 : f32 to vector<4x16x120xf32>
    %4 = tpu.concatenate %2, %3 in 2 : vector<4x16x8xf32>, vector<4x16x120xf32> -> vector<4x16x128xf32>
    %c0_6 = arith.constant 0 : index
    %c32 = arith.constant 32 : index
    %c0_7 = arith.constant 0 : index
    %5 = vector.load %arg5[%c0_6, %c32, %c0_7] : memref<4x48x128xf32, #tpu.memory_space<vmem>>, vector<4x16x128xf32>
    tpu.vector_store %arg5[%c0_6, %c32, %c0_7], %4 {strides = array<i32>} : memref<4x48x128xf32, #tpu.memory_space<vmem>>, vector<4x16x128xf32>,
    %c0_8 = arith.constant 0 : index
    %c30 = arith.constant 30 : index
    %c0_9 = arith.constant 0 : index
    %6 = vector.load %arg5[%c0_8, %c30, %c0_9] : memref<4x48x128xf32, #tpu.memory_space<vmem>>, vector<4x16x128xf32>
    %7 = arith.truncf %6 : vector<4x16x128xf32> to vector<4x16x128xbf16>
    %c0_10 = arith.constant 0 : index
    %c31 = arith.constant 31 : index
    %c0_11 = arith.constant 0 : index
    %8 = vector.load %arg5[%c0_10, %c31, %c0_11] : memref<4x48x128xf32, #tpu.memory_space<vmem>>, vector<4x16x128xf32>
    %9 = arith.truncf %8 : vector<4x16x128xf32> to vector<4x16x128xbf16>
    %c0_12 = arith.constant 0 : index
    %c32_13 = arith.constant 32 : index
    %c0_14 = arith.constant 0 : index
    %10 = vector.load %arg5[%c0_12, %c32_13, %c0_14] : memref<4x48x128xf32, #tpu.memory_space<vmem>>, vector<4x16x128xf32>
    %11 = arith.truncf %10 : vector<4x16x128xf32> to vector<4x16x128xbf16>
    %12 = tpu.concatenate %7, %9, %11 in 2 : vector<4x16x128xbf16>, vector<4x16x128xbf16>, vector<4x16x128xbf16> -> vector<4x16x384xbf16>
    %13 = vector.shape_cast %12 : vector<4x16x384xbf16> to vector<64x384xbf16>
    %c0_15 = arith.constant 0 : index
    %c0_16 = arith.constant 0 : index
    %c0_17 = arith.constant 0 : index
    %14 = vector.load %arg2[%c0_15, %c0_16, %c0_17] : memref<6x384x128xbf16, #tpu.memory_space<vmem>>, vector<1x384x128xbf16>
    %15 = vector.shape_cast %14 : vector<1x384x128xbf16> to vector<384x128xbf16>
    %cst_18 = arith.constant dense<0.000000e+00> : vector<64x128xf32>
    %16 = tpu.matmul %13, %15, %cst_18 {dimension_numbers = #tpu.dot_dimension_numbers<[1], [0], [0], [1], [0, 0, 1, 1], [], []>} : vector<64x384xbf16>, vector<384x128xbf16>, vector<64x128xf32> -> vector<64x128xf32>
    %c0_19 = arith.constant 0 : index
    %c0_20 = arith.constant 0 : index
    %c0_21 = arith.constant 0 : index
    %17 = vector.load %arg3[%c0_19, %c0_20, %c0_21] : memref<6x1x128xf32, #tpu.memory_space<vmem>>, vector<1x1x128xf32>
    %18 = vector.shape_cast %17 : vector<1x1x128xf32> to vector<1x128xf32>
    %19 = vector.broadcast %18 : vector<1x128xf32> to vector<64x128xf32>
    %20 = arith.addf %16, %19 : vector<64x128xf32>
    %cst_22 = arith.constant 0.000000e+00 : f32
    %21 = vector.broadcast %cst_22 : f32 to vector<64x128xf32>
    %22 = arith.maximumf %20, %21 : vector<64x128xf32>
    %23 = vector.shape_cast %22 : vector<64x128xf32> to vector<4x16x128xf32>
    %c0_23 = arith.constant 0 : index
    %c32_24 = arith.constant 32 : index
    %c0_25 = arith.constant 0 : index
    %24 = vector.load %arg5[%c0_23, %c32_24, %c0_25] : memref<4x48x128xf32, #tpu.memory_space<vmem>>, vector<4x16x128xf32>
    tpu.vector_store %arg5[%c0_23, %c32_24, %c0_25], %23 {strides = array<i32>} : memref<4x48x128xf32, #tpu.memory_space<vmem>>, vector<4x16x128xf32>,
    %c0_26 = arith.constant 0 : index
    %c28 = arith.constant 28 : index
    %c0_27 = arith.constant 0 : index
    %25 = vector.load %arg5[%c0_26, %c28, %c0_27] : memref<4x48x128xf32, #tpu.memory_space<vmem>>, vector<4x16x128xf32>
    %26 = arith.truncf %25 : vector<4x16x128xf32> to vector<4x16x128xbf16>
    %c0_28 = arith.constant 0 : index
    %c30_29 = arith.constant 30 : index
    %c0_30 = arith.constant 0 : index
    %27 = vector.load %arg5[%c0_28, %c30_29, %c0_30] : memref<4x48x128xf32, #tpu.memory_space<vmem>>, vector<4x16x128xf32>
    %28 = arith.truncf %27 : vector<4x16x128xf32> to vector<4x16x128xbf16>
    %c0_31 = arith.constant 0 : index
    %c32_32 = arith.constant 32 : index
    %c0_33 = arith.constant 0 : index
    %29 = vector.load %arg5[%c0_31, %c32_32, %c0_33] : memref<4x48x128xf32, #tpu.memory_space<vmem>>, vector<4x16x128xf32>
    %30 = arith.truncf %29 : vector<4x16x128xf32> to vector<4x16x128xbf16>
    %31 = tpu.concatenate %26, %28, %30 in 2 : vector<4x16x128xbf16>, vector<4x16x128xbf16>, vector<4x16x128xbf16> -> vector<4x16x384xbf16>
    %32 = vector.shape_cast %31 : vector<4x16x384xbf16> to vector<64x384xbf16>
    %c1 = arith.constant 1 : index
    %c0_34 = arith.constant 0 : index
    %c0_35 = arith.constant 0 : index
    %33 = vector.load %arg2[%c1, %c0_34, %c0_35] : memref<6x384x128xbf16, #tpu.memory_space<vmem>>, vector<1x384x128xbf16>
    %34 = vector.shape_cast %33 : vector<1x384x128xbf16> to vector<384x128xbf16>
    %cst_36 = arith.constant dense<0.000000e+00> : vector<64x128xf32>
    %35 = tpu.matmul %32, %34, %cst_36 {dimension_numbers = #tpu.dot_dimension_numbers<[1], [0], [0], [1], [0, 0, 1, 1], [], []>} : vector<64x384xbf16>, vector<384x128xbf16>, vector<64x128xf32> -> vector<64x128xf32>
    %c1_37 = arith.constant 1 : index
    %c0_38 = arith.constant 0 : index
    %c0_39 = arith.constant 0 : index
    %36 = vector.load %arg3[%c1_37, %c0_38, %c0_39] : memref<6x1x128xf32, #tpu.memory_space<vmem>>, vector<1x1x128xf32>
    %37 = vector.shape_cast %36 : vector<1x1x128xf32> to vector<1x128xf32>
    %38 = vector.broadcast %37 : vector<1x128xf32> to vector<64x128xf32>
    %39 = arith.addf %35, %38 : vector<64x128xf32>
    %cst_40 = arith.constant 0.000000e+00 : f32
    %40 = vector.broadcast %cst_40 : f32 to vector<64x128xf32>
    %41 = arith.maximumf %39, %40 : vector<64x128xf32>
    %42 = vector.shape_cast %41 : vector<64x128xf32> to vector<4x16x128xf32>
    %c0_41 = arith.constant 0 : index
    %c32_42 = arith.constant 32 : index
    %c0_43 = arith.constant 0 : index
    %43 = vector.load %arg5[%c0_41, %c32_42, %c0_43] : memref<4x48x128xf32, #tpu.memory_space<vmem>>, vector<4x16x128xf32>
    tpu.vector_store %arg5[%c0_41, %c32_42, %c0_43], %42 {strides = array<i32>} : memref<4x48x128xf32, #tpu.memory_space<vmem>>, vector<4x16x128xf32>,
    %c0_44 = arith.constant 0 : index
    %c24 = arith.constant 24 : index
    %c0_45 = arith.constant 0 : index
    %44 = vector.load %arg5[%c0_44, %c24, %c0_45] : memref<4x48x128xf32, #tpu.memory_space<vmem>>, vector<4x16x128xf32>
    %45 = arith.truncf %44 : vector<4x16x128xf32> to vector<4x16x128xbf16>
    %c0_46 = arith.constant 0 : index
    %c28_47 = arith.constant 28 : index
    %c0_48 = arith.constant 0 : index
    %46 = vector.load %arg5[%c0_46, %c28_47, %c0_48] : memref<4x48x128xf32, #tpu.memory_space<vmem>>, vector<4x16x128xf32>
    %47 = arith.truncf %46 : vector<4x16x128xf32> to vector<4x16x128xbf16>
    %c0_49 = arith.constant 0 : index
    %c32_50 = arith.constant 32 : index
    %c0_51 = arith.constant 0 : index
    %48 = vector.load %arg5[%c0_49, %c32_50, %c0_51] : memref<4x48x128xf32, #tpu.memory_space<vmem>>, vector<4x16x128xf32>
    %49 = arith.truncf %48 : vector<4x16x128xf32> to vector<4x16x128xbf16>
    %50 = tpu.concatenate %45, %47, %49 in 2 : vector<4x16x128xbf16>, vector<4x16x128xbf16>, vector<4x16x128xbf16> -> vector<4x16x384xbf16>
    %51 = vector.shape_cast %50 : vector<4x16x384xbf16> to vector<64x384xbf16>
    %c2 = arith.constant 2 : index
    %c0_52 = arith.constant 0 : index
    %c0_53 = arith.constant 0 : index
    %52 = vector.load %arg2[%c2, %c0_52, %c0_53] : memref<6x384x128xbf16, #tpu.memory_space<vmem>>, vector<1x384x128xbf16>
    %53 = vector.shape_cast %52 : vector<1x384x128xbf16> to vector<384x128xbf16>
    %cst_54 = arith.constant dense<0.000000e+00> : vector<64x128xf32>
    %54 = tpu.matmul %51, %53, %cst_54 {dimension_numbers = #tpu.dot_dimension_numbers<[1], [0], [0], [1], [0, 0, 1, 1], [], []>} : vector<64x384xbf16>, vector<384x128xbf16>, vector<64x128xf32> -> vector<64x128xf32>
    %c2_55 = arith.constant 2 : index
    %c0_56 = arith.constant 0 : index
    %c0_57 = arith.constant 0 : index
    %55 = vector.load %arg3[%c2_55, %c0_56, %c0_57] : memref<6x1x128xf32, #tpu.memory_space<vmem>>, vector<1x1x128xf32>
    %56 = vector.shape_cast %55 : vector<1x1x128xf32> to vector<1x128xf32>
    %57 = vector.broadcast %56 : vector<1x128xf32> to vector<64x128xf32>
    %58 = arith.addf %54, %57 : vector<64x128xf32>
    %cst_58 = arith.constant 0.000000e+00 : f32
    %59 = vector.broadcast %cst_58 : f32 to vector<64x128xf32>
    %60 = arith.maximumf %58, %59 : vector<64x128xf32>
    %61 = vector.shape_cast %60 : vector<64x128xf32> to vector<4x16x128xf32>
    %c0_59 = arith.constant 0 : index
    %c32_60 = arith.constant 32 : index
    %c0_61 = arith.constant 0 : index
    %62 = vector.load %arg5[%c0_59, %c32_60, %c0_61] : memref<4x48x128xf32, #tpu.memory_space<vmem>>, vector<4x16x128xf32>
    tpu.vector_store %arg5[%c0_59, %c32_60, %c0_61], %61 {strides = array<i32>} : memref<4x48x128xf32, #tpu.memory_space<vmem>>, vector<4x16x128xf32>,
    %c0_62 = arith.constant 0 : index
    %c16 = arith.constant 16 : index
    %c0_63 = arith.constant 0 : index
    %63 = vector.load %arg5[%c0_62, %c16, %c0_63] : memref<4x48x128xf32, #tpu.memory_space<vmem>>, vector<4x16x128xf32>
    %64 = arith.truncf %63 : vector<4x16x128xf32> to vector<4x16x128xbf16>
    %c0_64 = arith.constant 0 : index
    %c24_65 = arith.constant 24 : index
    %c0_66 = arith.constant 0 : index
    %65 = vector.load %arg5[%c0_64, %c24_65, %c0_66] : memref<4x48x128xf32, #tpu.memory_space<vmem>>, vector<4x16x128xf32>
    %66 = arith.truncf %65 : vector<4x16x128xf32> to vector<4x16x128xbf16>
    %c0_67 = arith.constant 0 : index
    %c32_68 = arith.constant 32 : index
    %c0_69 = arith.constant 0 : index
    %67 = vector.load %arg5[%c0_67, %c32_68, %c0_69] : memref<4x48x128xf32, #tpu.memory_space<vmem>>, vector<4x16x128xf32>
    %68 = arith.truncf %67 : vector<4x16x128xf32> to vector<4x16x128xbf16>
    %69 = tpu.concatenate %64, %66, %68 in 2 : vector<4x16x128xbf16>, vector<4x16x128xbf16>, vector<4x16x128xbf16> -> vector<4x16x384xbf16>
    %70 = vector.shape_cast %69 : vector<4x16x384xbf16> to vector<64x384xbf16>
    %c3 = arith.constant 3 : index
    %c0_70 = arith.constant 0 : index
    %c0_71 = arith.constant 0 : index
    %71 = vector.load %arg2[%c3, %c0_70, %c0_71] : memref<6x384x128xbf16, #tpu.memory_space<vmem>>, vector<1x384x128xbf16>
    %72 = vector.shape_cast %71 : vector<1x384x128xbf16> to vector<384x128xbf16>
    %cst_72 = arith.constant dense<0.000000e+00> : vector<64x128xf32>
    %73 = tpu.matmul %70, %72, %cst_72 {dimension_numbers = #tpu.dot_dimension_numbers<[1], [0], [0], [1], [0, 0, 1, 1], [], []>} : vector<64x384xbf16>, vector<384x128xbf16>, vector<64x128xf32> -> vector<64x128xf32>
    %c3_73 = arith.constant 3 : index
    %c0_74 = arith.constant 0 : index
    %c0_75 = arith.constant 0 : index
    %74 = vector.load %arg3[%c3_73, %c0_74, %c0_75] : memref<6x1x128xf32, #tpu.memory_space<vmem>>, vector<1x1x128xf32>
    %75 = vector.shape_cast %74 : vector<1x1x128xf32> to vector<1x128xf32>
    %76 = vector.broadcast %75 : vector<1x128xf32> to vector<64x128xf32>
    %77 = arith.addf %73, %76 : vector<64x128xf32>
    %cst_76 = arith.constant 0.000000e+00 : f32
    %78 = vector.broadcast %cst_76 : f32 to vector<64x128xf32>
    %79 = arith.maximumf %77, %78 : vector<64x128xf32>
    %80 = vector.shape_cast %79 : vector<64x128xf32> to vector<4x16x128xf32>
    %c0_77 = arith.constant 0 : index
    %c32_78 = arith.constant 32 : index
    %c0_79 = arith.constant 0 : index
    %81 = vector.load %arg5[%c0_77, %c32_78, %c0_79] : memref<4x48x128xf32, #tpu.memory_space<vmem>>, vector<4x16x128xf32>
    tpu.vector_store %arg5[%c0_77, %c32_78, %c0_79], %80 {strides = array<i32>} : memref<4x48x128xf32, #tpu.memory_space<vmem>>, vector<4x16x128xf32>,
    %c0_80 = arith.constant 0 : index
    %c0_81 = arith.constant 0 : index
    %c0_82 = arith.constant 0 : index
    %82 = vector.load %arg5[%c0_80, %c0_81, %c0_82] : memref<4x48x128xf32, #tpu.memory_space<vmem>>, vector<4x16x128xf32>
    %83 = arith.truncf %82 : vector<4x16x128xf32> to vector<4x16x128xbf16>
    %c0_83 = arith.constant 0 : index
    %c16_84 = arith.constant 16 : index
    %c0_85 = arith.constant 0 : index
    %84 = vector.load %arg5[%c0_83, %c16_84, %c0_85] : memref<4x48x128xf32, #tpu.memory_space<vmem>>, vector<4x16x128xf32>
    %85 = arith.truncf %84 : vector<4x16x128xf32> to vector<4x16x128xbf16>
    %c0_86 = arith.constant 0 : index
    %c32_87 = arith.constant 32 : index
    %c0_88 = arith.constant 0 : index
    %86 = vector.load %arg5[%c0_86, %c32_87, %c0_88] : memref<4x48x128xf32, #tpu.memory_space<vmem>>, vector<4x16x128xf32>
    %87 = arith.truncf %86 : vector<4x16x128xf32> to vector<4x16x128xbf16>
    %88 = tpu.concatenate %83, %85, %87 in 2 : vector<4x16x128xbf16>, vector<4x16x128xbf16>, vector<4x16x128xbf16> -> vector<4x16x384xbf16>
    %89 = vector.shape_cast %88 : vector<4x16x384xbf16> to vector<64x384xbf16>
    %c4 = arith.constant 4 : index
    %c0_89 = arith.constant 0 : index
    %c0_90 = arith.constant 0 : index
    %90 = vector.load %arg2[%c4, %c0_89, %c0_90] : memref<6x384x128xbf16, #tpu.memory_space<vmem>>, vector<1x384x128xbf16>
    %91 = vector.shape_cast %90 : vector<1x384x128xbf16> to vector<384x128xbf16>
    %cst_91 = arith.constant dense<0.000000e+00> : vector<64x128xf32>
    %92 = tpu.matmul %89, %91, %cst_91 {dimension_numbers = #tpu.dot_dimension_numbers<[1], [0], [0], [1], [0, 0, 1, 1], [], []>} : vector<64x384xbf16>, vector<384x128xbf16>, vector<64x128xf32> -> vector<64x128xf32>
    %c4_92 = arith.constant 4 : index
    %c0_93 = arith.constant 0 : index
    %c0_94 = arith.constant 0 : index
    %93 = vector.load %arg3[%c4_92, %c0_93, %c0_94] : memref<6x1x128xf32, #tpu.memory_space<vmem>>, vector<1x1x128xf32>
    %94 = vector.shape_cast %93 : vector<1x1x128xf32> to vector<1x128xf32>
    %95 = vector.broadcast %94 : vector<1x128xf32> to vector<64x128xf32>
    %96 = arith.addf %92, %95 : vector<64x128xf32>
    %cst_95 = arith.constant 0.000000e+00 : f32
    %97 = vector.broadcast %cst_95 : f32 to vector<64x128xf32>
    %98 = arith.maximumf %96, %97 : vector<64x128xf32>
    %99 = vector.shape_cast %98 : vector<64x128xf32> to vector<4x16x128xf32>
    %c0_96 = arith.constant 0 : index
    %c32_97 = arith.constant 32 : index
    %c0_98 = arith.constant 0 : index
    %100 = vector.load %arg5[%c0_96, %c32_97, %c0_98] : memref<4x48x128xf32, #tpu.memory_space<vmem>>, vector<4x16x128xf32>
    tpu.vector_store %arg5[%c0_96, %c32_97, %c0_98], %99 {strides = array<i32>} : memref<4x48x128xf32, #tpu.memory_space<vmem>>, vector<4x16x128xf32>,
    %c0_99 = arith.constant 0 : index
    %c0_100 = arith.constant 0 : index
    %c0_101 = arith.constant 0 : index
    %101 = vector.load %arg5[%c0_99, %c0_100, %c0_101] : memref<4x48x128xf32, #tpu.memory_space<vmem>>, vector<4x16x128xf32>
    %102 = arith.truncf %101 : vector<4x16x128xf32> to vector<4x16x128xbf16>
    %c0_102 = arith.constant 0 : index
    %c16_103 = arith.constant 16 : index
    %c0_104 = arith.constant 0 : index
    %103 = vector.load %arg5[%c0_102, %c16_103, %c0_104] : memref<4x48x128xf32, #tpu.memory_space<vmem>>, vector<4x16x128xf32>
    %104 = arith.truncf %103 : vector<4x16x128xf32> to vector<4x16x128xbf16>
    %c0_105 = arith.constant 0 : index
    %c32_106 = arith.constant 32 : index
    %c0_107 = arith.constant 0 : index
    %105 = vector.load %arg5[%c0_105, %c32_106, %c0_107] : memref<4x48x128xf32, #tpu.memory_space<vmem>>, vector<4x16x128xf32>
    %106 = arith.truncf %105 : vector<4x16x128xf32> to vector<4x16x128xbf16>
    %107 = tpu.concatenate %102, %104, %106 in 2 : vector<4x16x128xbf16>, vector<4x16x128xbf16>, vector<4x16x128xbf16> -> vector<4x16x384xbf16>
    %108 = vector.shape_cast %107 : vector<4x16x384xbf16> to vector<64x384xbf16>
    %c5 = arith.constant 5 : index
    %c0_108 = arith.constant 0 : index
    %c0_109 = arith.constant 0 : index
    %109 = vector.load %arg2[%c5, %c0_108, %c0_109] : memref<6x384x128xbf16, #tpu.memory_space<vmem>>, vector<1x384x128xbf16>
    %110 = vector.shape_cast %109 : vector<1x384x128xbf16> to vector<384x128xbf16>
    %cst_110 = arith.constant dense<0.000000e+00> : vector<64x128xf32>
    %111 = tpu.matmul %108, %110, %cst_110 {dimension_numbers = #tpu.dot_dimension_numbers<[1], [0], [0], [1], [0, 0, 1, 1], [], []>} : vector<64x384xbf16>, vector<384x128xbf16>, vector<64x128xf32> -> vector<64x128xf32>
    %c5_111 = arith.constant 5 : index
    %c0_112 = arith.constant 0 : index
    %c0_113 = arith.constant 0 : index
    %112 = vector.load %arg3[%c5_111, %c0_112, %c0_113] : memref<6x1x128xf32, #tpu.memory_space<vmem>>, vector<1x1x128xf32>
    %113 = vector.shape_cast %112 : vector<1x1x128xf32> to vector<1x128xf32>
    %114 = vector.broadcast %113 : vector<1x128xf32> to vector<64x128xf32>
    %115 = arith.addf %111, %114 : vector<64x128xf32>
    %cst_114 = arith.constant 0.000000e+00 : f32
    %116 = vector.broadcast %cst_114 : f32 to vector<64x128xf32>
    %117 = arith.maximumf %115, %116 : vector<64x128xf32>
    %118 = vector.shape_cast %117 : vector<64x128xf32> to vector<4x16x128xf32>
    %c0_115 = arith.constant 0 : index
    %c32_116 = arith.constant 32 : index
    %c0_117 = arith.constant 0 : index
    %119 = vector.load %arg5[%c0_115, %c32_116, %c0_117] : memref<4x48x128xf32, #tpu.memory_space<vmem>>, vector<4x16x128xf32>
    tpu.vector_store %arg5[%c0_115, %c32_116, %c0_117], %118 {strides = array<i32>} : memref<4x48x128xf32, #tpu.memory_space<vmem>>, vector<4x16x128xf32>,
    %c0_118 = arith.constant 0 : index
    %c32_119 = arith.constant 32 : index
    %c0_120 = arith.constant 0 : index
    %120 = vector.load %arg5[%c0_118, %c32_119, %c0_120] : memref<4x48x128xf32, #tpu.memory_space<vmem>>, vector<4x16x128xf32>
    %c0_121 = arith.constant 0 : index
    %c0_122 = arith.constant 0 : index
    %c0_123 = arith.constant 0 : index
    %121 = vector.load %arg1[%c0_121, %c0_122, %c0_123] : memref<4x16x8xf32, #tpu.memory_space<vmem>>, vector<4x16x8xf32>
    %cst_124 = arith.constant 0.000000e+00 : f32
    %122 = vector.broadcast %cst_124 : f32 to vector<4x16x120xf32>
    %123 = tpu.concatenate %121, %122 in 2 : vector<4x16x8xf32>, vector<4x16x120xf32> -> vector<4x16x128xf32>
    %124 = arith.addf %120, %123 : vector<4x16x128xf32>
    %c0_125 = arith.constant 0 : index
    %c0_126 = arith.constant 0 : index
    %c0_127 = arith.constant 0 : index
    %125 = vector.load %arg4[%c0_125, %c0_126, %c0_127] : memref<4x16x128xf32, #tpu.memory_space<vmem>>, vector<4x16x128xf32>
    tpu.vector_store %arg4[%c0_125, %c0_126, %c0_127], %124 {strides = array<i32>} : memref<4x16x128xf32, #tpu.memory_space<vmem>>, vector<4x16x128xf32>,
    return
  }
  func.func @transform_0(%arg0: i32) -> (i32, i32, i32) {
    %c0_i32 = arith.constant 0 : i32
    %c0_i32_0 = arith.constant 0 : i32
    %c0_i32_1 = arith.constant 0 : i32
    return %arg0, %c0_i32, %c0_i32_0 : i32, i32, i32
  }
  func.func @transform_1(%arg0: i32) -> (i32, i32, i32) {
    %c0_i32 = arith.constant 0 : i32
    %c0_i32_0 = arith.constant 0 : i32
    %c0_i32_1 = arith.constant 0 : i32
    %c0_i32_2 = arith.constant 0 : i32
    return %c0_i32, %c0_i32_0, %c0_i32_1 : i32, i32, i32
  }
  func.func @transform_2(%arg0: i32) -> (i32, i32, i32) {
    %c0_i32 = arith.constant 0 : i32
    %c0_i32_0 = arith.constant 0 : i32
    %c0_i32_1 = arith.constant 0 : i32
    %c0_i32_2 = arith.constant 0 : i32
    return %c0_i32, %c0_i32_0, %c0_i32_1 : i32, i32, i32
  }
  func.func @transform_3(%arg0: i32) -> (i32, i32, i32) {
    %c0_i32 = arith.constant 0 : i32
    %c0_i32_0 = arith.constant 0 : i32
    %c0_i32_1 = arith.constant 0 : i32
    return %arg0, %c0_i32, %c0_i32_0 : i32, i32, i32
  }
}

</mosaic_0001>

<llo_original>
// kernel: tpu_custom_call.1
$region0: #{tpu_custom_call.1}
  #allocation0 [shape = 'u32[]', space=smem, size = 0x4, offset = 0x4, fixed_abs, tag = 'smem constant byte address 0x4 - core index']
  #allocation1 [shape = 'u32[144,128]{1,0:T(1,128)}', space=vmem, size = 0x12000, scoped, tag = 'internal scratch']
  #allocation2 [shape = 'f32[4,48,128]{2,1,0:T(8,128)}', space=vmem, size = 0x18000, scoped, tag = 'scratch operand']
  %s0 = inlined_call_operand.vmem [shape: f32[8,16,8], index: 0, kind: input, shape index: {}]
  %s1 = inlined_call_operand.hbm [shape: bf16[6,384,128], index: 1, kind: input, shape index: {}]
  %s2 = inlined_call_operand.vmem [shape: f32[6,1,128], index: 2, kind: input, shape index: {}]
  %s3 = inlined_call_operand.hbm [shape: f32[8,16,128], index: 3, kind: output, shape index: {}]
  %s4 = sld [smem:[#allocation0]]
  $region49: #{tpu_custom_call.1} parent=0
    _
  %s6 = ssub.s32 1, %s4
  %s7 = scalar_select 0, %s6, %s4
  $region1: #{tpu_custom_call.1} parent=0
    #allocation3 [shape = 'u8[589824]{0}', space=vmem, size = 0x90000, scoped, tag = 'input window, operand 1, single buffered']
    #allocation4 [shape = 's32[2]{0}', space=sflag, size = 0x8, scoped, tag = 'scoped memory for tpu_custom_call.1']
    #allocation5 [shape = 's32[2]{0}', space=sflag, size = 0x8, scoped, tag = 'scoped memory for tpu_custom_call.1']
    #allocation6 [shape = 'u8[65536]{0}', space=vmem, size = 0x10000, scoped, tag = 'output window, operand 0']
    %8 = vsyncpa [#allocation4], 0
    %9 = vsyncpa [#allocation5], 0
    %s10 = scalar_lea.sflag [#allocation5], 1
    %11 = vsyncpa %s10, 0
    loop: start=0, step=1, limit=4
    $region2: #{tpu_custom_call.1} parent=1 // loop_pre_header
      _
    $region3: #{tpu_custom_call.1} parent=1 // loop_header
      %s13 = sphi 0, %s17
      %p14 = scmp.ge.s32.totalorder %s13, 4
      %s23 = sphi 0, %s25
      %s26 = sphi 0, %s23
      %s27 = sphi 0, %s26
      %s43 = sphi 0, %s27
      %s47 = sphi 0, %s47
      %s49 = sphi 0, %s47
      %s50 = sphi 0, %s49
      %s64 = sphi 0, %s50
      %s68 = sphi 0, %s68
      %s70 = sphi 0, %s68
      %s71 = sphi 0, %s70
      %s85 = sphi 0, %s71
      %s91 = sphi 0, %s93
      %s94 = sphi 0, %s91
      %s95 = sphi 0, %s94
      %s111 = sphi 0, %s95
    $region4: #{tpu_custom_call.1} parent=1 // loop_header_branch
      %16 = sbr.rel (%p14) target = $region8
    $region5: #{tpu_custom_call.1} parent=1 // loop_body
      %s18 = ssub.s32 %s13, 1
      %s19 = ssub.s32 %s13, 2
      %s20 = sadd.s32 %s13, 1
      %s21 = ssub.s32 %s13, %s20
      %p22 = scmp.eq.s32.totalorder %s21, 0
      %s24 = sadd.s32 %s23, 1
      %s25 = scalar_select %p22, %s23, %s24
      %p28 = pneg %p22
      %p29 = scmp.eq.s32.totalorder %s13, 1
      %p30 = por %p28, %p29
      %p31 = scmp.ne.s32.totalorder %s23, %s26
      %p32 = scmp.eq.s32.totalorder %s13, 0
      %p33 = por %p31, %p32
      %p34 = scmp.ne.s32.totalorder %s23, %s26
      %p35 = scmp.eq.s32.totalorder %s18, 1
      %p36 = por %p34, %p35
      %p37 = scmp.ne.s32.totalorder %s26, %s27
      %p38 = scmp.eq.s32.totalorder %s18, 0
      %p39 = por %p37, %p38
      %p40 = scmp.ne.s32.totalorder %s26, %s27
      %p41 = scmp.eq.s32.totalorder %s19, 1
      %p42 = por %p40, %p41
      %p44 = scmp.ne.s32.totalorder %s27, %s43
      %p45 = scmp.eq.s32.totalorder %s19, 0
      %p46 = por %p44, %p45
      %s48 = sadd.s32 %s47, 1
      %p51 = scmp.eq.s32.totalorder %s13, 1
      %p52 = scmp.ne.s32.totalorder %s47, %s49
      %p53 = scmp.eq.s32.totalorder %s13, 0
      %p54 = por %p52, %p53
      %p55 = scmp.ne.s32.totalorder %s47, %s49
      %p56 = scmp.eq.s32.totalorder %s18, 1
      %p57 = por %p55, %p56
      %p58 = scmp.ne.s32.totalorder %s49, %s50
      %p59 = scmp.eq.s32.totalorder %s18, 0
      %p60 = por %p58, %p59
      %p61 = scmp.ne.s32.totalorder %s49, %s50
      %p62 = scmp.eq.s32.totalorder %s19, 1
      %p63 = por %p61, %p62
      %p65 = scmp.ne.s32.totalorder %s50, %s64
      %p66 = scmp.eq.s32.totalorder %s19, 0
      %p67 = por %p65, %p66
      %s69 = sadd.s32 %s68, 1
      %p72 = scmp.eq.s32.totalorder %s13, 1
      %p73 = scmp.ne.s32.totalorder %s68, %s70
      %p74 = scmp.eq.s32.totalorder %s13, 0
      %p75 = por %p73, %p74
      %p76 = scmp.ne.s32.totalorder %s68, %s70
      %p77 = scmp.eq.s32.totalorder %s18, 1
      %p78 = por %p76, %p77
      %p79 = scmp.ne.s32.totalorder %s70, %s71
      %p80 = scmp.eq.s32.totalorder %s18, 0
      %p81 = por %p79, %p80
      %p82 = scmp.ne.s32.totalorder %s70, %s71
      %p83 = scmp.eq.s32.totalorder %s19, 1
      %p84 = por %p82, %p83
      %p86 = scmp.ne.s32.totalorder %s71, %s85
      %p87 = scmp.eq.s32.totalorder %s19, 0
      %p88 = por %p86, %p87
      %s89 = ssub.s32 %s13, %s20
      %p90 = scmp.eq.s32.totalorder %s89, 0
      %s92 = sadd.s32 %s91, 1
      %s93 = scalar_select %p90, %s91, %s92
      %p96 = pneg %p90
      %p97 = scmp.eq.s32.totalorder %s13, 1
      %p98 = por %p96, %p97
      %p99 = scmp.ne.s32.totalorder %s91, %s94
      %p100 = scmp.eq.s32.totalorder %s13, 0
      %p101 = por %p99, %p100
      %p102 = scmp.ne.s32.totalorder %s91, %s94
      %p103 = scmp.eq.s32.totalorder %s18, 1
      %p104 = por %p102, %p103
      %p105 = scmp.ne.s32.totalorder %s94, %s95
      %p106 = scmp.eq.s32.totalorder %s18, 0
      %p107 = por %p105, %p106
      %p108 = scmp.ne.s32.totalorder %s94, %s95
      %p109 = scmp.eq.s32.totalorder %s19, 1
      %p110 = por %p108, %p109
      %p112 = scmp.ne.s32.totalorder %s95, %s111
      %p113 = scmp.eq.s32.totalorder %s19, 0
      %p114 = por %p112, %p113
      %p115 = scmp.le.s32.totalorder 1, %s13
      %p116 = scmp.lt.s32.totalorder %s13, 3
      %p117 = pnand %p115, %p116
      %p118 = pneg %p117
      // Predicated region
      $region9: #{tpu_custom_call.1} parent=5 // pred_check
        _
      $region10: #{tpu_custom_call.1} parent=5 // pred_check_branch
        %120 = sbr.rel (%p117) target = $region12
      $region11: #{tpu_custom_call.1} parent=5 // pred_region
        %s121 = ssub.s32 %s13, 1
        // Predicated region
        $region13: #{tpu_custom_call.1} parent=11 // pred_check
          %p122 = pneg %p60
        $region14: #{tpu_custom_call.1} parent=11 // pred_check_branch
          %124 = sbr.rel (%p122) target = $region16
        $region15: #{tpu_custom_call.1} parent=11 // pred_region
          %s126 = ssub.s32 18432, 18432
          %127 = vsyncadd [#allocation4], %s126
          %s128 = sshll.u32 [#allocation3], 4
          %s129 = int_to_ptr.vmem [resolvable:$true] %s128
          %134 = dma.hbm_to_vmem [thread:$0]  %s1, 18432, %s129, [#allocation4], 64, 64, 4
        $region16: #{tpu_custom_call.1} parent=11 // pred_fallthru
          _
        // Predicated region
        $region17: #{tpu_custom_call.1} parent=11 // pred_check
          %p135 = pneg %p81
        $region18: #{tpu_custom_call.1} parent=11 // pred_check_branch
          %137 = sbr.rel (%p135) target = $region20
        $region19: #{tpu_custom_call.1} parent=11 // pred_region
          _
        $region20: #{tpu_custom_call.1} parent=11 // pred_fallthru
          _
      $region12: #{tpu_custom_call.1} parent=5 // pred_fallthru
        _
      %p138 = scmp.lt.s32.totalorder %s13, 2
      // Predicated region
      $region21: #{tpu_custom_call.1} parent=5 // pred_check
        %p139 = pneg %p138
      $region22: #{tpu_custom_call.1} parent=5 // pred_check_branch
        %141 = sbr.rel (%p139) target = $region24
      $region23: #{tpu_custom_call.1} parent=5 // pred_region
        // Predicated region
        $region25: #{tpu_custom_call.1} parent=23 // pred_check
          %p142 = pneg %p33
        $region26: #{tpu_custom_call.1} parent=23 // pred_check_branch
          %144 = sbr.rel (%p142) target = $region28
        $region27: #{tpu_custom_call.1} parent=23 // pred_region
          %s145 = smul.u32 4, %s13
          %p146 = scmp.lt.s32.totalorder %s145, 7
          %s147 = scalar_select %p146, %s145, 7
          %s148 = smul.addr %s147, 2
          %s149 = smul.addr %s148, 8
          %s150 = scalar_lea.vmem %s0, %s149
          %s151 = smul.u32 4, %s13
        $region28: #{tpu_custom_call.1} parent=23 // pred_fallthru
          _
      $region24: #{tpu_custom_call.1} parent=5 // pred_fallthru
        _
      %p152 = scmp.le.s32.totalorder 1, %s13
      %p153 = scmp.lt.s32.totalorder %s13, 3
      %p154 = pnand %p152, %p153
      %p155 = pneg %p154
      // Predicated region
      $region29: #{tpu_custom_call.1} parent=5 // pred_check
        _
      $region30: #{tpu_custom_call.1} parent=5 // pred_check_branch
        %157 = sbr.rel (%p154) target = $region32
      $region31: #{tpu_custom_call.1} parent=5 // pred_region
        %s158 = ssub.s32 %s13, 1
        // Predicated region
        $region33: #{tpu_custom_call.1} parent=31 // pred_check
          %p159 = pneg %p60
        $region34: #{tpu_custom_call.1} parent=31 // pred_check_branch
          %161 = sbr.rel (%p159) target = $region36
        $region35: #{tpu_custom_call.1} parent=31 // pred_region
          %162 = dma.done [#allocation4], 18432
        $region36: #{tpu_custom_call.1} parent=31 // pred_fallthru
          _
        %s163 = smul.u32 4, %s18
        %p164 = scmp.lt.s32.totalorder %s163, 7
        %s165 = scalar_select %p164, %s163, 7
        %s166 = smul.addr %s165, 2
        %s167 = smul.addr %s166, 8
        %s168 = scalar_lea.vmem %s0, %s167
        %p169 = pneg %p39
        %p170 = pneg %p36
        %p171 = pneg %p60
        %p172 = pneg %p57
        %p173 = pneg %p81
        %p174 = pneg %p78
        %p175 = pneg %p107
        %p176 = pneg %p104
        %s177 = sand.u32 %s94, 1
        %s178 = scalar_lea.sflag [#allocation5], %s177
        %s179 = sand.u32 %s94, 1
        %s180 = smul.addr %s179, 64
        %s181 = scalar_lea.vmem [#allocation6], %s180
        %s182 = smul.u32 4, %s18
        %p183 = scmp.lt.s32.totalorder %s182, 7
        %s184 = scalar_select %p183, %s182, 7
        %s185 = smul.addr %s184, 2
        %s186 = smul.addr %s185, 8
        %s187 = scalar_lea.vmem %s0, %s186
        %s188 = smul.u32 4, %s18
        %s189 = smul.u32 4, %s18
        %191 = vst [vmem:[#allocation2] sm:$0xff] 0.0
        %192 = vst [vmem:[#allocation2 + $0x8] sm:$0xff] 0.0
        %193 = vst [vmem:[#allocation2 + $0x10] sm:$0xff] 0.0
        %194 = vst [vmem:[#allocation2 + $0x18] sm:$0xff] 0.0
        %195 = vst [vmem:[#allocation2 + $0x30] sm:$0xff] 0.0
        %196 = vst [vmem:[#allocation2 + $0x38] sm:$0xff] 0.0
        %197 = vst [vmem:[#allocation2 + $0x40] sm:$0xff] 0.0
        %198 = vst [vmem:[#allocation2 + $0x48] sm:$0xff] 0.0
        %199 = vst [vmem:[#allocation2 + $0x60] sm:$0xff] 0.0
        %200 = vst [vmem:[#allocation2 + $0x68] sm:$0xff] 0.0
        %201 = vst [vmem:[#allocation2 + $0x70] sm:$0xff] 0.0
        %202 = vst [vmem:[#allocation2 + $0x78] sm:$0xff] 0.0
        %203 = vst [vmem:[#allocation2 + $0x90] sm:$0xff] 0.0
        %204 = vst [vmem:[#allocation2 + $0x98] sm:$0xff] 0.0
        %205 = vst [vmem:[#allocation2 + $0xa0] sm:$0xff] 0.0
        %206 = vst [vmem:[#allocation2 + $0xa8] sm:$0xff] 0.0
        %v207 = vld [vmem:[%s187] sm:$0xff]
        %v208 = vld [vmem:[%s187 + $0x8] sm:$0xff]
        %v209 = vld [vmem:[%s187 + $0x10] sm:$0xff]
        %v210 = vld [vmem:[%s187 + $0x18] sm:$0xff]
        %v211 = vld [vmem:[%s187 + $0x20] sm:$0xff]
        %v212 = vld [vmem:[%s187 + $0x28] sm:$0xff]
        %v213 = vld [vmem:[%s187 + $0x30] sm:$0xff]
        %v214 = vld [vmem:[%s187 + $0x38] sm:$0xff]
        %vm215 = vcmask 64512
        %v216 = vsel %vm215, %v207, 0.0
        %v217 = vsel %vm215, %v208, 0.0
        %v218 = vsel %vm215, %v209, 0.0
        %v219 = vsel %vm215, %v210, 0.0
        %v220 = vsel %vm215, %v211, 0.0
        %v221 = vsel %vm215, %v212, 0.0
        %v222 = vsel %vm215, %v213, 0.0
        %v223 = vsel %vm215, %v214, 0.0
        %224 = vst [vmem:[#allocation2 + $0x20] sm:$0xff] %v216
        %225 = vst [vmem:[#allocation2 + $0x28] sm:$0xff] %v217
        %226 = vst [vmem:[#allocation2 + $0x50] sm:$0xff] %v218
        %227 = vst [vmem:[#allocation2 + $0x58] sm:$0xff] %v219
        %228 = vst [vmem:[#allocation2 + $0x80] sm:$0xff] %v220
        %229 = vst [vmem:[#allocation2 + $0x88] sm:$0xff] %v221
        %230 = vst [vmem:[#allocation2 + $0xb0] sm:$0xff] %v222
        %231 = vst [vmem:[#allocation2 + $0xb8] sm:$0xff] %v223
        %v232 = vld [vmem:[#allocation2 + $0x1e] sm:$0xff]
        %v233 = vld [vmem:[#allocation2 + $0x26] sm:$0xff]
        %v234 = vld [vmem:[#allocation2 + $0x4e] sm:$0xff]
        %v235 = vld [vmem:[#allocation2 + $0x56] sm:$0xff]
        %v236 = vld [vmem:[#allocation2 + $0x7e] sm:$0xff]
        %v237 = vld [vmem:[#allocation2 + $0x86] sm:$0xff]
        %v238 = vld [vmem:[#allocation2 + $0xae] sm:$0xff]
        %v239 = vld [vmem:[#allocation2 + $0xb6] sm:$0xff]
        %v240 = vpack.c.bf16 %v233, %v232
        %v241 = vpack.c.bf16 %v235, %v234
        %v242 = vpack.c.bf16 %v237, %v236
        %v243 = vpack.c.bf16 %v239, %v238
        %v244 = vld [vmem:[#allocation2 + $0x1f] sm:$0xff]
        %v245 = vld [vmem:[#allocation2 + $0x27] sm:$0xff]
        %v246 = vld [vmem:[#allocation2 + $0x4f] sm:$0xff]
        %v247 = vld [vmem:[#allocation2 + $0x57] sm:$0xff]
        %v248 = vld [vmem:[#allocation2 + $0x7f] sm:$0xff]
        %v249 = vld [vmem:[#allocation2 + $0x87] sm:$0xff]
        %v250 = vld [vmem:[#allocation2 + $0xaf] sm:$0xff]
        %v251 = vld [vmem:[#allocation2 + $0xb7] sm:$0xff]
        %v252 = vpack.c.bf16 %v245, %v244
        %v253 = vpack.c.bf16 %v247, %v246
        %v254 = vpack.c.bf16 %v249, %v248
        %v255 = vpack.c.bf16 %v251, %v250
        %v256 = vld [vmem:[#allocation2 + $0x20] sm:$0xff]
        %v257 = vld [vmem:[#allocation2 + $0x28] sm:$0xff]
        %v258 = vld [vmem:[#allocation2 + $0x50] sm:$0xff]
        %v259 = vld [vmem:[#allocation2 + $0x58] sm:$0xff]
        %v260 = vld [vmem:[#allocation2 + $0x80] sm:$0xff]
        %v261 = vld [vmem:[#allocation2 + $0x88] sm:$0xff]
        %v262 = vld [vmem:[#allocation2 + $0xb0] sm:$0xff]
        %v263 = vld [vmem:[#allocation2 + $0xb8] sm:$0xff]
        %v264 = vpack.c.bf16 %v257, %v256
        %v265 = vpack.c.bf16 %v259, %v258
        %v266 = vpack.c.bf16 %v261, %v260
        %v267 = vpack.c.bf16 %v263, %v262
        %v268 = vld [vmem:[#allocation3] sm:$0xf]
        %v269 = vld [vmem:[#allocation3 + $0x4] sm:$0xf]
        %v270 = vld [vmem:[#allocation3 + $0x8] sm:$0xf]
        %v271 = vld [vmem:[#allocation3 + $0xc] sm:$0xf]
        %v272 = vld [vmem:[#allocation3 + $0x10] sm:$0xf]
        %v273 = vld [vmem:[#allocation3 + $0x14] sm:$0xf]
        %v274 = vld [vmem:[#allocation3 + $0x18] sm:$0xf]
        %v275 = vld [vmem:[#allocation3 + $0x1c] sm:$0xf]
        %v276 = vld [vmem:[#allocation3 + $0x20] sm:$0xf]
        %v277 = vld [vmem:[#allocation3 + $0x24] sm:$0xf]
        %v278 = vld [vmem:[#allocation3 + $0x28] sm:$0xf]
        %v279 = vld [vmem:[#allocation3 + $0x2c] sm:$0xf]
        %v280 = vld [vmem:[#allocation3 + $0x30] sm:$0xf]
        %v281 = vld [vmem:[#allocation3 + $0x34] sm:$0xf]
        %v282 = vld [vmem:[#allocation3 + $0x38] sm:$0xf]
        %v283 = vld [vmem:[#allocation3 + $0x3c] sm:$0xf]
        %v284 = vld [vmem:[#allocation3 + $0x40] sm:$0xf]
        %v285 = vld [vmem:[#allocation3 + $0x44] sm:$0xf]
        %v286 = vld [vmem:[#allocation3 + $0x48] sm:$0xf]
        %v287 = vld [vmem:[#allocation3 + $0x4c] sm:$0xf]
        %v288 = vld [vmem:[#allocation3 + $0x50] sm:$0xf]
        %v289 = vld [vmem:[#allocation3 + $0x54] sm:$0xf]
        %v290 = vld [vmem:[#allocation3 + $0x58] sm:$0xf]
        %v291 = vld [vmem:[#allocation3 + $0x5c] sm:$0xf]
        %v292 = vld [vmem:[#allocation3 + $0x60] sm:$0xf]
        %v293 = vld [vmem:[#allocation3 + $0x64] sm:$0xf]
        %v294 = vld [vmem:[#allocation3 + $0x68] sm:$0xf]
        %v295 = vld [vmem:[#allocation3 + $0x6c] sm:$0xf]
        %v296 = vld [vmem:[#allocation3 + $0x70] sm:$0xf]
        %v297 = vld [vmem:[#allocation3 + $0x74] sm:$0xf]
        %v298 = vld [vmem:[#allocation3 + $0x78] sm:$0xf]
        %v299 = vld [vmem:[#allocation3 + $0x7c] sm:$0xf]
        %v300 = vld [vmem:[#allocation3 + $0x80] sm:$0xf]
        %v301 = vld [vmem:[#allocation3 + $0x84] sm:$0xf]
        %v302 = vld [vmem:[#allocation3 + $0x88] sm:$0xf]
        %v303 = vld [vmem:[#allocation3 + $0x8c] sm:$0xf]
        %v304 = vld [vmem:[#allocation3 + $0x90] sm:$0xf]
        %v305 = vld [vmem:[#allocation3 + $0x94] sm:$0xf]
        %v306 = vld [vmem:[#allocation3 + $0x98] sm:$0xf]
        %v307 = vld [vmem:[#allocation3 + $0x9c] sm:$0xf]
        %v308 = vld [vmem:[#allocation3 + $0xa0] sm:$0xf]
        %v309 = vld [vmem:[#allocation3 + $0xa4] sm:$0xf]
        %v310 = vld [vmem:[#allocation3 + $0xa8] sm:$0xf]
        %v311 = vld [vmem:[#allocation3 + $0xac] sm:$0xf]
        %v312 = vld [vmem:[#allocation3 + $0xb0] sm:$0xf]
        %v313 = vld [vmem:[#allocation3 + $0xb4] sm:$0xf]
        %v314 = vld [vmem:[#allocation3 + $0xb8] sm:$0xf]
        %v315 = vld [vmem:[#allocation3 + $0xbc] sm:$0xf]
        %v316 = vld [vmem:[%s2] sm:$0x1]
        %v318 = vlaneseq
        %v319 = vshrl.u32 %v318, 7
        %v320 = vsub.s32 0, %v319
        %v321 = vrot.slane %v316, %v320
        %v371 = vunpack.c.l.b16 %v268
        %v372 = vunpack.c.l.b16 %v269
        %v373 = vunpack.c.l.b16 %v270
        %v374 = vunpack.c.l.b16 %v271
        %v375 = vunpack.c.l.b16 %v272
        %v376 = vunpack.c.l.b16 %v273
        %v377 = vunpack.c.l.b16 %v274
        %v378 = vunpack.c.l.b16 %v275
        %v379 = vunpack.c.l.b16 %v276
        %v380 = vunpack.c.l.b16 %v277
        %v381 = vunpack.c.l.b16 %v278
        %v382 = vunpack.c.l.b16 %v279
        %v383 = vunpack.c.l.b16 %v280
        %v384 = vunpack.c.l.b16 %v281
        %v385 = vunpack.c.l.b16 %v282
        %v386 = vunpack.c.l.b16 %v283
        %v387 = vunpack.c.l.b16 %v284
        %v388 = vunpack.c.l.b16 %v285
        %v389 = vunpack.c.l.b16 %v286
        %v390 = vunpack.c.l.b16 %v287
        %v391 = vunpack.c.l.b16 %v288
        %v392 = vunpack.c.l.b16 %v289
        %v393 = vunpack.c.l.b16 %v290
        %v394 = vunpack.c.l.b16 %v291
        %v395 = vunpack.c.l.b16 %v292
        %v396 = vunpack.c.l.b16 %v293
        %v397 = vunpack.c.l.b16 %v294
        %v398 = vunpack.c.l.b16 %v295
        %v399 = vunpack.c.l.b16 %v296
        %v400 = vunpack.c.l.b16 %v297
        %v401 = vunpack.c.l.b16 %v298
        %v402 = vunpack.c.l.b16 %v299
        %v403 = vunpack.c.l.b16 %v300
        %v404 = vunpack.c.l.b16 %v301
        %v405 = vunpack.c.l.b16 %v302
        %v406 = vunpack.c.l.b16 %v303
        %v407 = vunpack.c.l.b16 %v304
        %v408 = vunpack.c.l.b16 %v305
        %v409 = vunpack.c.l.b16 %v306
        %v410 = vunpack.c.l.b16 %v307
        %v411 = vunpack.c.l.b16 %v308
        %v412 = vunpack.c.l.b16 %v309
        %v413 = vunpack.c.l.b16 %v310
        %v414 = vunpack.c.l.b16 %v311
        %v415 = vunpack.c.l.b16 %v312
        %v416 = vunpack.c.l.b16 %v313
        %v417 = vunpack.c.l.b16 %v314
        %v418 = vunpack.c.l.b16 %v315
        %v419 = vpack.c.b16 %v372, %v371
        %v420 = vpack.c.b16 %v374, %v373
        %v421 = vpack.c.b16 %v376, %v375
        %v422 = vpack.c.b16 %v378, %v377
        %v423 = vpack.c.b16 %v380, %v379
        %v424 = vpack.c.b16 %v382, %v381
        %v425 = vpack.c.b16 %v384, %v383
        %v426 = vpack.c.b16 %v386, %v385
        %v427 = vpack.c.b16 %v388, %v387
        %v428 = vpack.c.b16 %v390, %v389
        %v429 = vpack.c.b16 %v392, %v391
        %v430 = vpack.c.b16 %v394, %v393
        %v431 = vpack.c.b16 %v396, %v395
        %v432 = vpack.c.b16 %v398, %v397
        %v433 = vpack.c.b16 %v400, %v399
        %v434 = vpack.c.b16 %v402, %v401
        %v435 = vpack.c.b16 %v404, %v403
        %v436 = vpack.c.b16 %v406, %v405
        %v437 = vpack.c.b16 %v408, %v407
        %v438 = vpack.c.b16 %v410, %v409
        %v439 = vpack.c.b16 %v412, %v411
        %v440 = vpack.c.b16 %v414, %v413
        %v441 = vpack.c.b16 %v416, %v415
        %v442 = vpack.c.b16 %v418, %v417
        %467 = vmatprep.subr.bf16.mxu0 0
        %468 = vmatpush1.bf16.msra.mxu0 %v426
        %469 = vmatprep.subr.bf16.mxu0 0
        %470 = vmatpush1.bf16.msra.mxu0 %v425
        %471 = vmatprep.subr.bf16.mxu0 0
        %472 = vmatpush1.bf16.msra.mxu0 %v424
        %473 = vmatprep.subr.bf16.mxu0 0
        %474 = vmatpush1.bf16.msra.mxu0 %v423
        %475 = vmatprep.subr.bf16.mxu0 0
        %476 = vmatpush1.bf16.msra.mxu0 %v422
        %477 = vmatprep.subr.bf16.mxu0 0
        %478 = vmatpush1.bf16.msra.mxu0 %v421
        %479 = vmatprep.subr.bf16.mxu0 0
        %480 = vmatpush1.bf16.msra.mxu0 %v420
        %481 = vmatprep.subr.bf16.mxu0 0
        %482 = vmatpush1.bf16.msra.mxu0 %v419
        %483 = vmatprep.subr.bf16.mxu0 0
        %484 = vmatpush2.bf16.msra.mxu0 %v434
        %485 = vmatprep.subr.bf16.mxu0 0
        %486 = vmatpush2.bf16.msra.mxu0 %v433
        %487 = vmatprep.subr.bf16.mxu0 0
        %488 = vmatpush2.bf16.msra.mxu0 %v432
        %489 = vmatprep.subr.bf16.mxu0 0
        %490 = vmatpush2.bf16.msra.mxu0 %v431
        %491 = vmatprep.subr.bf16.mxu0 0
        %492 = vmatpush2.bf16.msra.mxu0 %v430
        %493 = vmatprep.subr.bf16.mxu0 0
        %494 = vmatpush2.bf16.msra.mxu0 %v429
        %495 = vmatprep.subr.bf16.mxu0 0
        %496 = vmatpush2.bf16.msra.mxu0 %v428
        %497 = vmatprep.subr.bf16.mxu0 0
        %498 = vmatpush2.bf16.msra.mxu0 %v427
        %499 = vmatprep.mubr.bf16.mxu0 %v252
        %500 = vmatmul.mubr.bf16.gmra.mxu0 %v240
        %v501 = vpop.f32.mrf.mxu0
        %v502 = vadd.f32 %v321, %v501
        %v503 = vpop.f32.mrf.mxu0
        %v504 = vpop.f32.mrf.mxu0
        %v505 = vadd.f32 %v321, %v504
        %v506 = vpop.f32.mrf.mxu0
        %507 = vmatprep.mubr.bf16.mxu0 %v253
        %508 = vmatmul.mubr.bf16.gmra.mxu0 %v241
        %v509 = vpop.f32.mrf.mxu0
        %v510 = vadd.f32 %v321, %v509
        %v511 = vpop.f32.mrf.mxu0
        %v512 = vpop.f32.mrf.mxu0
        %v513 = vadd.f32 %v321, %v512
        %v514 = vpop.f32.mrf.mxu0
        %515 = vmatprep.mubr.bf16.mxu0 %v254
        %516 = vmatmul.mubr.bf16.gmra.mxu0 %v242
        %v517 = vpop.f32.mrf.mxu0
        %v518 = vadd.f32 %v321, %v517
        %v519 = vpop.f32.mrf.mxu0
        %v520 = vpop.f32.mrf.mxu0
        %v521 = vadd.f32 %v321, %v520
        %v522 = vpop.f32.mrf.mxu0
        %523 = vmatprep.mubr.bf16.mxu0 %v255
        %524 = vmatmul.mubr.bf16.gmra.mxu0 %v243
        %v525 = vpop.f32.mrf.mxu0
        %v526 = vadd.f32 %v321, %v525
        %v527 = vpop.f32.mrf.mxu0
        %v528 = vpop.f32.mrf.mxu0
        %v529 = vadd.f32 %v321, %v528
        %v530 = vpop.f32.mrf.mxu0
        %531 = vdwg.mxu0
        %532 = vmatprep.subr.bf16.mxu0 0
        %533 = vmatpush1.bf16.msra.mxu0 %v442
        %534 = vmatprep.subr.bf16.mxu0 0
        %535 = vmatpush1.bf16.msra.mxu0 %v441
        %536 = vmatprep.subr.bf16.mxu0 0
        %537 = vmatpush1.bf16.msra.mxu0 %v440
        %538 = vmatprep.subr.bf16.mxu0 0
        %539 = vmatpush1.bf16.msra.mxu0 %v439
        %540 = vmatprep.subr.bf16.mxu0 0
        %541 = vmatpush1.bf16.msra.mxu0 %v438
        %542 = vmatprep.subr.bf16.mxu0 0
        %543 = vmatpush1.bf16.msra.mxu0 %v437
        %544 = vmatprep.subr.bf16.mxu0 0
        %545 = vmatpush1.bf16.msra.mxu0 %v436
        %546 = vmatprep.subr.bf16.mxu0 0
        %547 = vmatpush1.bf16.msra.mxu0 %v435
        %548 = vmatprep.subr.bf16.mxu0 0
        %549 = vmatpush2.bf16.msra.mxu0 0
        %550 = vmatprep.subr.bf16.mxu0 0
        %551 = vmatpush2.bf16.msra.mxu0 0
        %552 = vmatprep.subr.bf16.mxu0 0
        %553 = vmatpush2.bf16.msra.mxu0 0
        %554 = vmatprep.subr.bf16.mxu0 0
        %555 = vmatpush2.bf16.msra.mxu0 0
        %556 = vmatprep.subr.bf16.mxu0 0
        %557 = vmatpush2.bf16.msra.mxu0 0
        %558 = vmatprep.subr.bf16.mxu0 0
        %559 = vmatpush2.bf16.msra.mxu0 0
        %560 = vmatprep.subr.bf16.mxu0 0
        %561 = vmatpush2.bf16.msra.mxu0 0
        %562 = vmatprep.subr.bf16.mxu0 0
        %563 = vmatpush2.bf16.msra.mxu0 0
        %564 = vmatprep.mubr.bf16.mxu0 0
        %565 = vmatmul.mubr.bf16.gmra.mxu0 %v264
        %v566 = vpop.f32.mrf.mxu0
        %v567 = vadd.f32 %v502, %v566
        %v568 = vpop.f32.mrf.mxu0
        %v569 = vpop.f32.mrf.mxu0
        %v570 = vadd.f32 %v505, %v569
        %v571 = vpop.f32.mrf.mxu0
        %572 = vmatprep.mubr.bf16.mxu0 0
        %573 = vmatmul.mubr.bf16.gmra.mxu0 %v265
        %v574 = vpop.f32.mrf.mxu0
        %v575 = vadd.f32 %v510, %v574
        %v576 = vpop.f32.mrf.mxu0
        %v577 = vpop.f32.mrf.mxu0
        %v578 = vadd.f32 %v513, %v577
        %v579 = vpop.f32.mrf.mxu0
        %580 = vmatprep.mubr.bf16.mxu0 0
        %581 = vmatmul.mubr.bf16.gmra.mxu0 %v266
        %v582 = vpop.f32.mrf.mxu0
        %v583 = vadd.f32 %v518, %v582
        %v584 = vpop.f32.mrf.mxu0
        %v585 = vpop.f32.mrf.mxu0
        %v586 = vadd.f32 %v521, %v585
        %v587 = vpop.f32.mrf.mxu0
        %588 = vmatprep.mubr.bf16.mxu0 0
        %589 = vmatmul.mubr.bf16.gmra.mxu0 %v267
        %v590 = vpop.f32.mrf.mxu0
        %v591 = vadd.f32 %v526, %v590
        %v592 = vpop.f32.mrf.mxu0
        %v593 = vpop.f32.mrf.mxu0
        %v594 = vadd.f32 %v529, %v593
        %v595 = vpop.f32.mrf.mxu0
        %596 = vdwg.mxu0
        %v597 = vmax.f32 %v567, 0.0
        %v598 = vmax.f32 %v570, 0.0
        %v599 = vmax.f32 %v575, 0.0
        %v600 = vmax.f32 %v578, 0.0
        %v601 = vmax.f32 %v583, 0.0
        %v602 = vmax.f32 %v586, 0.0
        %v603 = vmax.f32 %v591, 0.0
        %v604 = vmax.f32 %v594, 0.0
        %605 = vst [vmem:[#allocation2 + $0x20] sm:$0xff] %v597
        %606 = vst [vmem:[#allocation2 + $0x28] sm:$0xff] %v598
        %607 = vst [vmem:[#allocation2 + $0x50] sm:$0xff] %v599
        %608 = vst [vmem:[#allocation2 + $0x58] sm:$0xff] %v600
        %609 = vst [vmem:[#allocation2 + $0x80] sm:$0xff] %v601
        %610 = vst [vmem:[#allocation2 + $0x88] sm:$0xff] %v602
        %611 = vst [vmem:[#allocation2 + $0xb0] sm:$0xff] %v603
        %612 = vst [vmem:[#allocation2 + $0xb8] sm:$0xff] %v604
        %v613 = vld [vmem:[#allocation2 + $0x1c] sm:$0xff]
        %v614 = vld [vmem:[#allocation2 + $0x24] sm:$0xff]
        %v615 = vld [vmem:[#allocation2 + $0x4c] sm:$0xff]
        %v616 = vld [vmem:[#allocation2 + $0x54] sm:$0xff]
        %v617 = vld [vmem:[#allocation2 + $0x7c] sm:$0xff]
        %v618 = vld [vmem:[#allocation2 + $0x84] sm:$0xff]
        %v619 = vld [vmem:[#allocation2 + $0xac] sm:$0xff]
        %v620 = vld [vmem:[#allocation2 + $0xb4] sm:$0xff]
        %v621 = vpack.c.bf16 %v614, %v613
        %v622 = vpack.c.bf16 %v616, %v615
        %v623 = vpack.c.bf16 %v618, %v617
        %v624 = vpack.c.bf16 %v620, %v619
        %v625 = vld [vmem:[#allocation2 + $0x1e] sm:$0xff]
        %v626 = vld [vmem:[#allocation2 + $0x26] sm:$0xff]
        %v627 = vld [vmem:[#allocation2 + $0x4e] sm:$0xff]
        %v628 = vld [vmem:[#allocation2 + $0x56] sm:$0xff]
        %v629 = vld [vmem:[#allocation2 + $0x7e] sm:$0xff]
        %v630 = vld [vmem:[#allocation2 + $0x86] sm:$0xff]
        %v631 = vld [vmem:[#allocation2 + $0xae] sm:$0xff]
        %v632 = vld [vmem:[#allocation2 + $0xb6] sm:$0xff]
        %v633 = vpack.c.bf16 %v626, %v625
        %v634 = vpack.c.bf16 %v628, %v627
        %v635 = vpack.c.bf16 %v630, %v629
        %v636 = vpack.c.bf16 %v632, %v631
        %v637 = vld [vmem:[#allocation2 + $0x20] sm:$0xff]
        %v638 = vld [vmem:[#allocation2 + $0x28] sm:$0xff]
        %v639 = vld [vmem:[#allocation2 + $0x50] sm:$0xff]
        %v640 = vld [vmem:[#allocation2 + $0x58] sm:$0xff]
        %v641 = vld [vmem:[#allocation2 + $0x80] sm:$0xff]
        %v642 = vld [vmem:[#allocation2 + $0x88] sm:$0xff]
        %v643 = vld [vmem:[#allocation2 + $0xb0] sm:$0xff]
        %v644 = vld [vmem:[#allocation2 + $0xb8] sm:$0xff]
        %v645 = vpack.c.bf16 %v638, %v637
        %v646 = vpack.c.bf16 %v640, %v639
        %v647 = vpack.c.bf16 %v642, %v641
        %v648 = vpack.c.bf16 %v644, %v643
        %s649 = scalar_lea.vmem [#allocation3], 192
        %v650 = vld [vmem:[%s649] sm:$0xf]
        %v651 = vld [vmem:[%s649 + $0x4] sm:$0xf]
        %v652 = vld [vmem:[%s649 + $0x8] sm:$0xf]
        %v653 = vld [vmem:[%s649 + $0xc] sm:$0xf]
        %v654 = vld [vmem:[%s649 + $0x10] sm:$0xf]
        %v655 = vld [vmem:[%s649 + $0x14] sm:$0xf]
        %v656 = vld [vmem:[%s649 + $0x18] sm:$0xf]
        %v657 = vld [vmem:[%s649 + $0x1c] sm:$0xf]
        %v658 = vld [vmem:[%s649 + $0x20] sm:$0xf]
        %v659 = vld [vmem:[%s649 + $0x24] sm:$0xf]
        %v660 = vld [vmem:[%s649 + $0x28] sm:$0xf]
        %v661 = vld [vmem:[%s649 + $0x2c] sm:$0xf]
        %v662 = vld [vmem:[%s649 + $0x30] sm:$0xf]
        %v663 = vld [vmem:[%s649 + $0x34] sm:$0xf]
        %v664 = vld [vmem:[%s649 + $0x38] sm:$0xf]
        %v665 = vld [vmem:[%s649 + $0x3c] sm:$0xf]
        %v666 = vld [vmem:[%s649 + $0x40] sm:$0xf]
        %v667 = vld [vmem:[%s649 + $0x44] sm:$0xf]
        %v668 = vld [vmem:[%s649 + $0x48] sm:$0xf]
        %v669 = vld [vmem:[%s649 + $0x4c] sm:$0xf]
        %v670 = vld [vmem:[%s649 + $0x50] sm:$0xf]
        %v671 = vld [vmem:[%s649 + $0x54] sm:$0xf]
        %v672 = vld [vmem:[%s649 + $0x58] sm:$0xf]
        %v673 = vld [vmem:[%s649 + $0x5c] sm:$0xf]
        %v674 = vld [vmem:[%s649 + $0x60] sm:$0xf]
        %v675 = vld [vmem:[%s649 + $0x64] sm:$0xf]
        %v676 = vld [vmem:[%s649 + $0x68] sm:$0xf]
        %v677 = vld [vmem:[%s649 + $0x6c] sm:$0xf]
        %v678 = vld [vmem:[%s649 + $0x70] sm:$0xf]
        %v679 = vld [vmem:[%s649 + $0x74] sm:$0xf]
        %v680 = vld [vmem:[%s649 + $0x78] sm:$0xf]
        %v681 = vld [vmem:[%s649 + $0x7c] sm:$0xf]
        %v682 = vld [vmem:[%s649 + $0x80] sm:$0xf]
        %v683 = vld [vmem:[%s649 + $0x84] sm:$0xf]
        %v684 = vld [vmem:[%s649 + $0x88] sm:$0xf]
        %v685 = vld [vmem:[%s649 + $0x8c] sm:$0xf]
        %v686 = vld [vmem:[%s649 + $0x90] sm:$0xf]
        %v687 = vld [vmem:[%s649 + $0x94] sm:$0xf]
        %v688 = vld [vmem:[%s649 + $0x98] sm:$0xf]
        %v689 = vld [vmem:[%s649 + $0x9c] sm:$0xf]
        %v690 = vld [vmem:[%s649 + $0xa0] sm:$0xf]
        %v691 = vld [vmem:[%s649 + $0xa4] sm:$0xf]
        %v692 = vld [vmem:[%s649 + $0xa8] sm:$0xf]
        %v693 = vld [vmem:[%s649 + $0xac] sm:$0xf]
        %v694 = vld [vmem:[%s649 + $0xb0] sm:$0xf]
        %v695 = vld [vmem:[%s649 + $0xb4] sm:$0xf]
        %v696 = vld [vmem:[%s649 + $0xb8] sm:$0xf]
        %v697 = vld [vmem:[%s649 + $0xbc] sm:$0xf]
        %s698 = scalar_lea.vmem %s2, 1
        %v699 = vld [vmem:[%s698] sm:$0x1]
        %v701 = vlaneseq
        %v702 = vshrl.u32 %v701, 7
        %v703 = vsub.s32 0, %v702
        %v704 = vrot.slane %v699, %v703
        %v754 = vunpack.c.l.b16 %v650
        %v755 = vunpack.c.l.b16 %v651
        %v756 = vunpack.c.l.b16 %v652
        %v757 = vunpack.c.l.b16 %v653
        %v758 = vunpack.c.l.b16 %v654
        %v759 = vunpack.c.l.b16 %v655
        %v760 = vunpack.c.l.b16 %v656
        %v761 = vunpack.c.l.b16 %v657
        %v762 = vunpack.c.l.b16 %v658
        %v763 = vunpack.c.l.b16 %v659
        %v764 = vunpack.c.l.b16 %v660
        %v765 = vunpack.c.l.b16 %v661
        %v766 = vunpack.c.l.b16 %v662
        %v767 = vunpack.c.l.b16 %v663
        %v768 = vunpack.c.l.b16 %v664
        %v769 = vunpack.c.l.b16 %v665
        %v770 = vunpack.c.l.b16 %v666
        %v771 = vunpack.c.l.b16 %v667
        %v772 = vunpack.c.l.b16 %v668
        %v773 = vunpack.c.l.b16 %v669
        %v774 = vunpack.c.l.b16 %v670
        %v775 = vunpack.c.l.b16 %v671
        %v776 = vunpack.c.l.b16 %v672
        %v777 = vunpack.c.l.b16 %v673
        %v778 = vunpack.c.l.b16 %v674
        %v779 = vunpack.c.l.b16 %v675
        %v780 = vunpack.c.l.b16 %v676
        %v781 = vunpack.c.l.b16 %v677
        %v782 = vunpack.c.l.b16 %v678
        %v783 = vunpack.c.l.b16 %v679
        %v784 = vunpack.c.l.b16 %v680
        %v785 = vunpack.c.l.b16 %v681
        %v786 = vunpack.c.l.b16 %v682
        %v787 = vunpack.c.l.b16 %v683
        %v788 = vunpack.c.l.b16 %v684
        %v789 = vunpack.c.l.b16 %v685
        %v790 = vunpack.c.l.b16 %v686
        %v791 = vunpack.c.l.b16 %v687
        %v792 = vunpack.c.l.b16 %v688
        %v793 = vunpack.c.l.b16 %v689
        %v794 = vunpack.c.l.b16 %v690
        %v795 = vunpack.c.l.b16 %v691
        %v796 = vunpack.c.l.b16 %v692
        %v797 = vunpack.c.l.b16 %v693
        %v798 = vunpack.c.l.b16 %v694
        %v799 = vunpack.c.l.b16 %v695
        %v800 = vunpack.c.l.b16 %v696
        %v801 = vunpack.c.l.b16 %v697
        %v802 = vpack.c.b16 %v755, %v754
        %v803 = vpack.c.b16 %v757, %v756
        %v804 = vpack.c.b16 %v759, %v758
        %v805 = vpack.c.b16 %v761, %v760
        %v806 = vpack.c.b16 %v763, %v762
        %v807 = vpack.c.b16 %v765, %v764
        %v808 = vpack.c.b16 %v767, %v766
        %v809 = vpack.c.b16 %v769, %v768
        %v810 = vpack.c.b16 %v771, %v770
        %v811 = vpack.c.b16 %v773, %v772
        %v812 = vpack.c.b16 %v775, %v774
        %v813 = vpack.c.b16 %v777, %v776
        %v814 = vpack.c.b16 %v779, %v778
        %v815 = vpack.c.b16 %v781, %v780
        %v816 = vpack.c.b16 %v783, %v782
        %v817 = vpack.c.b16 %v785, %v784
        %v818 = vpack.c.b16 %v787, %v786
        %v819 = vpack.c.b16 %v789, %v788
        %v820 = vpack.c.b16 %v791, %v790
        %v821 = vpack.c.b16 %v793, %v792
        %v822 = vpack.c.b16 %v795, %v794
        %v823 = vpack.c.b16 %v797, %v796
        %v824 = vpack.c.b16 %v799, %v798
        %v825 = vpack.c.b16 %v801, %v800
        %850 = vmatprep.subr.bf16.mxu0 0
        %851 = vmatpush1.bf16.msra.mxu0 %v809
        %852 = vmatprep.subr.bf16.mxu0 0
        %853 = vmatpush1.bf16.msra.mxu0 %v808
        %854 = vmatprep.subr.bf16.mxu0 0
        %855 = vmatpush1.bf16.msra.mxu0 %v807
        %856 = vmatprep.subr.bf16.mxu0 0
        %857 = vmatpush1.bf16.msra.mxu0 %v806
        %858 = vmatprep.subr.bf16.mxu0 0
        %859 = vmatpush1.bf16.msra.mxu0 %v805
        %860 = vmatprep.subr.bf16.mxu0 0
        %861 = vmatpush1.bf16.msra.mxu0 %v804
        %862 = vmatprep.subr.bf16.mxu0 0
        %863 = vmatpush1.bf16.msra.mxu0 %v803
        %864 = vmatprep.subr.bf16.mxu0 0
        %865 = vmatpush1.bf16.msra.mxu0 %v802
        %866 = vmatprep.subr.bf16.mxu0 0
        %867 = vmatpush2.bf16.msra.mxu0 %v817
        %868 = vmatprep.subr.bf16.mxu0 0
        %869 = vmatpush2.bf16.msra.mxu0 %v816
        %870 = vmatprep.subr.bf16.mxu0 0
        %871 = vmatpush2.bf16.msra.mxu0 %v815
        %872 = vmatprep.subr.bf16.mxu0 0
        %873 = vmatpush2.bf16.msra.mxu0 %v814
        %874 = vmatprep.subr.bf16.mxu0 0
        %875 = vmatpush2.bf16.msra.mxu0 %v813
        %876 = vmatprep.subr.bf16.mxu0 0
        %877 = vmatpush2.bf16.msra.mxu0 %v812
        %878 = vmatprep.subr.bf16.mxu0 0
        %879 = vmatpush2.bf16.msra.mxu0 %v811
        %880 = vmatprep.subr.bf16.mxu0 0
        %881 = vmatpush2.bf16.msra.mxu0 %v810
        %882 = vmatprep.mubr.bf16.mxu0 %v633
        %883 = vmatmul.mubr.bf16.gmra.mxu0 %v621
        %v884 = vpop.f32.mrf.mxu0
        %v885 = vadd.f32 %v704, %v884
        %v886 = vpop.f32.mrf.mxu0
        %v887 = vpop.f32.mrf.mxu0
        %v888 = vadd.f32 %v704, %v887
        %v889 = vpop.f32.mrf.mxu0
        %890 = vmatprep.mubr.bf16.mxu0 %v634
        %891 = vmatmul.mubr.bf16.gmra.mxu0 %v622
        %v892 = vpop.f32.mrf.mxu0
        %v893 = vadd.f32 %v704, %v892
        %v894 = vpop.f32.mrf.mxu0
        %v895 = vpop.f32.mrf.mxu0
        %v896 = vadd.f32 %v704, %v895
        %v897 = vpop.f32.mrf.mxu0
        %898 = vmatprep.mubr.bf16.mxu0 %v635
        %899 = vmatmul.mubr.bf16.gmra.mxu0 %v623
        %v900 = vpop.f32.mrf.mxu0
        %v901 = vadd.f32 %v704, %v900
        %v902 = vpop.f32.mrf.mxu0
        %v903 = vpop.f32.mrf.mxu0
        %v904 = vadd.f32 %v704, %v903
        %v905 = vpop.f32.mrf.mxu0
        %906 = vmatprep.mubr.bf16.mxu0 %v636
        %907 = vmatmul.mubr.bf16.gmra.mxu0 %v624
        %v908 = vpop.f32.mrf.mxu0
        %v909 = vadd.f32 %v704, %v908
        %v910 = vpop.f32.mrf.mxu0
        %v911 = vpop.f32.mrf.mxu0
        %v912 = vadd.f32 %v704, %v911
        %v913 = vpop.f32.mrf.mxu0
        %914 = vdwg.mxu0
        %915 = vmatprep.subr.bf16.mxu0 0
        %916 = vmatpush1.bf16.msra.mxu0 %v825
        %917 = vmatprep.subr.bf16.mxu0 0
        %918 = vmatpush1.bf16.msra.mxu0 %v824
        %919 = vmatprep.subr.bf16.mxu0 0
        %920 = vmatpush1.bf16.msra.mxu0 %v823
        %921 = vmatprep.subr.bf16.mxu0 0
        %922 = vmatpush1.bf16.msra.mxu0 %v822
        %923 = vmatprep.subr.bf16.mxu0 0
        %924 = vmatpush1.bf16.msra.mxu0 %v821
        %925 = vmatprep.subr.bf16.mxu0 0
        %926 = vmatpush1.bf16.msra.mxu0 %v820
        %927 = vmatprep.subr.bf16.mxu0 0
        %928 = vmatpush1.bf16.msra.mxu0 %v819
        %929 = vmatprep.subr.bf16.mxu0 0
        %930 = vmatpush1.bf16.msra.mxu0 %v818
        %931 = vmatprep.subr.bf16.mxu0 0
        %932 = vmatpush2.bf16.msra.mxu0 0
        %933 = vmatprep.subr.bf16.mxu0 0
        %934 = vmatpush2.bf16.msra.mxu0 0
        %935 = vmatprep.subr.bf16.mxu0 0
        %936 = vmatpush2.bf16.msra.mxu0 0
        %937 = vmatprep.subr.bf16.mxu0 0
        %938 = vmatpush2.bf16.msra.mxu0 0
        %939 = vmatprep.subr.bf16.mxu0 0
        %940 = vmatpush2.bf16.msra.mxu0 0
        %941 = vmatprep.subr.bf16.mxu0 0
        %942 = vmatpush2.bf16.msra.mxu0 0
        %943 = vmatprep.subr.bf16.mxu0 0
        %944 = vmatpush2.bf16.msra.mxu0 0
        %945 = vmatprep.subr.bf16.mxu0 0
        %946 = vmatpush2.bf16.msra.mxu0 0
        %947 = vmatprep.mubr.bf16.mxu0 0
        %948 = vmatmul.mubr.bf16.gmra.mxu0 %v645
        %v949 = vpop.f32.mrf.mxu0
        %v950 = vadd.f32 %v885, %v949
        %v951 = vpop.f32.mrf.mxu0
        %v952 = vpop.f32.mrf.mxu0
        %v953 = vadd.f32 %v888, %v952
        %v954 = vpop.f32.mrf.mxu0
        %955 = vmatprep.mubr.bf16.mxu0 0
        %956 = vmatmul.mubr.bf16.gmra.mxu0 %v646
        %v957 = vpop.f32.mrf.mxu0
        %v958 = vadd.f32 %v893, %v957
        %v959 = vpop.f32.mrf.mxu0
        %v960 = vpop.f32.mrf.mxu0
        %v961 = vadd.f32 %v896, %v960
        %v962 = vpop.f32.mrf.mxu0
        %963 = vmatprep.mubr.bf16.mxu0 0
        %964 = vmatmul.mubr.bf16.gmra.mxu0 %v647
        %v965 = vpop.f32.mrf.mxu0
        %v966 = vadd.f32 %v901, %v965
        %v967 = vpop.f32.mrf.mxu0
        %v968 = vpop.f32.mrf.mxu0
        %v969 = vadd.f32 %v904, %v968
        %v970 = vpop.f32.mrf.mxu0
        %971 = vmatprep.mubr.bf16.mxu0 0
        %972 = vmatmul.mubr.bf16.gmra.mxu0 %v648
        %v973 = vpop.f32.mrf.mxu0
        %v974 = vadd.f32 %v909, %v973
        %v975 = vpop.f32.mrf.mxu0
        %v976 = vpop.f32.mrf.mxu0
        %v977 = vadd.f32 %v912, %v976
        %v978 = vpop.f32.mrf.mxu0
        %979 = vdwg.mxu0
        %v980 = vmax.f32 %v950, 0.0
        %v981 = vmax.f32 %v953, 0.0
        %v982 = vmax.f32 %v958, 0.0
        %v983 = vmax.f32 %v961, 0.0
        %v984 = vmax.f32 %v966, 0.0
        %v985 = vmax.f32 %v969, 0.0
        %v986 = vmax.f32 %v974, 0.0
        %v987 = vmax.f32 %v977, 0.0
        %988 = vst [vmem:[#allocation2 + $0x20] sm:$0xff] %v980
        %989 = vst [vmem:[#allocation2 + $0x28] sm:$0xff] %v981
        %990 = vst [vmem:[#allocation2 + $0x50] sm:$0xff] %v982
        %991 = vst [vmem:[#allocation2 + $0x58] sm:$0xff] %v983
        %992 = vst [vmem:[#allocation2 + $0x80] sm:$0xff] %v984
        %993 = vst [vmem:[#allocation2 + $0x88] sm:$0xff] %v985
        %994 = vst [vmem:[#allocation2 + $0xb0] sm:$0xff] %v986
        %995 = vst [vmem:[#allocation2 + $0xb8] sm:$0xff] %v987
        %v996 = vld [vmem:[#allocation2 + $0x18] sm:$0xff]
        %v997 = vld [vmem:[#allocation2 + $0x20] sm:$0xff]
        %v998 = vld [vmem:[#allocation2 + $0x48] sm:$0xff]
        %v999 = vld [vmem:[#allocation2 + $0x50] sm:$0xff]
        %v1000 = vld [vmem:[#allocation2 + $0x78] sm:$0xff]
        %v1001 = vld [vmem:[#allocation2 + $0x80] sm:$0xff]
        %v1002 = vld [vmem:[#allocation2 + $0xa8] sm:$0xff]
        %v1003 = vld [vmem:[#allocation2 + $0xb0] sm:$0xff]
        %v1004 = vpack.c.bf16 %v997, %v996
        %v1005 = vpack.c.bf16 %v999, %v998
        %v1006 = vpack.c.bf16 %v1001, %v1000
        %v1007 = vpack.c.bf16 %v1003, %v1002
        %v1008 = vld [vmem:[#allocation2 + $0x1c] sm:$0xff]
        %v1009 = vld [vmem:[#allocation2 + $0x24] sm:$0xff]
        %v1010 = vld [vmem:[#allocation2 + $0x4c] sm:$0xff]
        %v1011 = vld [vmem:[#allocation2 + $0x54] sm:$0xff]
        %v1012 = vld [vmem:[#allocation2 + $0x7c] sm:$0xff]
        %v1013 = vld [vmem:[#allocation2 + $0x84] sm:$0xff]
        %v1014 = vld [vmem:[#allocation2 + $0xac] sm:$0xff]
        %v1015 = vld [vmem:[#allocation2 + $0xb4] sm:$0xff]
        %v1016 = vpack.c.bf16 %v1009, %v1008
        %v1017 = vpack.c.bf16 %v1011, %v1010
        %v1018 = vpack.c.bf16 %v1013, %v1012
        %v1019 = vpack.c.bf16 %v1015, %v1014
        %v1020 = vld [vmem:[#allocation2 + $0x20] sm:$0xff]
        %v1021 = vld [vmem:[#allocation2 + $0x28] sm:$0xff]
        %v1022 = vld [vmem:[#allocation2 + $0x50] sm:$0xff]
        %v1023 = vld [vmem:[#allocation2 + $0x58] sm:$0xff]
        %v1024 = vld [vmem:[#allocation2 + $0x80] sm:$0xff]
        %v1025 = vld [vmem:[#allocation2 + $0x88] sm:$0xff]
        %v1026 = vld [vmem:[#allocation2 + $0xb0] sm:$0xff]
        %v1027 = vld [vmem:[#allocation2 + $0xb8] sm:$0xff]
        %v1028 = vpack.c.bf16 %v1021, %v1020
        %v1029 = vpack.c.bf16 %v1023, %v1022
        %v1030 = vpack.c.bf16 %v1025, %v1024
        %v1031 = vpack.c.bf16 %v1027, %v1026
        %s1032 = scalar_lea.vmem [#allocation3], 384
        %v1033 = vld [vmem:[%s1032] sm:$0xf]
        %v1034 = vld [vmem:[%s1032 + $0x4] sm:$0xf]
        %v1035 = vld [vmem:[%s1032 + $0x8] sm:$0xf]
        %v1036 = vld [vmem:[%s1032 + $0xc] sm:$0xf]
        %v1037 = vld [vmem:[%s1032 + $0x10] sm:$0xf]
        %v1038 = vld [vmem:[%s1032 + $0x14] sm:$0xf]
        %v1039 = vld [vmem:[%s1032 + $0x18] sm:$0xf]
        %v1040 = vld [vmem:[%s1032 + $0x1c] sm:$0xf]
        %v1041 = vld [vmem:[%s1032 + $0x20] sm:$0xf]
        %v1042 = vld [vmem:[%s1032 + $0x24] sm:$0xf]
        %v1043 = vld [vmem:[%s1032 + $0x28] sm:$0xf]
        %v1044 = vld [vmem:[%s1032 + $0x2c] sm:$0xf]
        %v1045 = vld [vmem:[%s1032 + $0x30] sm:$0xf]
        %v1046 = vld [vmem:[%s1032 + $0x34] sm:$0xf]
        %v1047 = vld [vmem:[%s1032 + $0x38] sm:$0xf]
        %v1048 = vld [vmem:[%s1032 + $0x3c] sm:$0xf]
        %v1049 = vld [vmem:[%s1032 + $0x40] sm:$0xf]
        %v1050 = vld [vmem:[%s1032 + $0x44] sm:$0xf]
        %v1051 = vld [vmem:[%s1032 + $0x48] sm:$0xf]
        %v1052 = vld [vmem:[%s1032 + $0x4c] sm:$0xf]
        %v1053 = vld [vmem:[%s1032 + $0x50] sm:$0xf]
        %v1054 = vld [vmem:[%s1032 + $0x54] sm:$0xf]
        %v1055 = vld [vmem:[%s1032 + $0x58] sm:$0xf]
        %v1056 = vld [vmem:[%s1032 + $0x5c] sm:$0xf]
        %v1057 = vld [vmem:[%s1032 + $0x60] sm:$0xf]
        %v1058 = vld [vmem:[%s1032 + $0x64] sm:$0xf]
        %v1059 = vld [vmem:[%s1032 + $0x68] sm:$0xf]
        %v1060 = vld [vmem:[%s1032 + $0x6c] sm:$0xf]
        %v1061 = vld [vmem:[%s1032 + $0x70] sm:$0xf]
        %v1062 = vld [vmem:[%s1032 + $0x74] sm:$0xf]
        %v1063 = vld [vmem:[%s1032 + $0x78] sm:$0xf]
        %v1064 = vld [vmem:[%s1032 + $0x7c] sm:$0xf]
        %v1065 = vld [vmem:[%s1032 + $0x80] sm:$0xf]
        %v1066 = vld [vmem:[%s1032 + $0x84] sm:$0xf]
        %v1067 = vld [vmem:[%s1032 + $0x88] sm:$0xf]
        %v1068 = vld [vmem:[%s1032 + $0x8c] sm:$0xf]
        %v1069 = vld [vmem:[%s1032 + $0x90] sm:$0xf]
        %v1070 = vld [vmem:[%s1032 + $0x94] sm:$0xf]
        %v1071 = vld [vmem:[%s1032 + $0x98] sm:$0xf]
        %v1072 = vld [vmem:[%s1032 + $0x9c] sm:$0xf]
        %v1073 = vld [vmem:[%s1032 + $0xa0] sm:$0xf]
        %v1074 = vld [vmem:[%s1032 + $0xa4] sm:$0xf]
        %v1075 = vld [vmem:[%s1032 + $0xa8] sm:$0xf]
        %v1076 = vld [vmem:[%s1032 + $0xac] sm:$0xf]
        %v1077 = vld [vmem:[%s1032 + $0xb0] sm:$0xf]
        %v1078 = vld [vmem:[%s1032 + $0xb4] sm:$0xf]
        %v1079 = vld [vmem:[%s1032 + $0xb8] sm:$0xf]
        %v1080 = vld [vmem:[%s1032 + $0xbc] sm:$0xf]
        %s1081 = scalar_lea.vmem %s2, 2
        %v1082 = vld [vmem:[%s1081] sm:$0x1]
        %v1084 = vlaneseq
        %v1085 = vshrl.u32 %v1084, 7
        %v1086 = vsub.s32 0, %v1085
        %v1087 = vrot.slane %v1082, %v1086
        %v1137 = vunpack.c.l.b16 %v1033
        %v1138 = vunpack.c.l.b16 %v1034
        %v1139 = vunpack.c.l.b16 %v1035
        %v1140 = vunpack.c.l.b16 %v1036
        %v1141 = vunpack.c.l.b16 %v1037
        %v1142 = vunpack.c.l.b16 %v1038
        %v1143 = vunpack.c.l.b16 %v1039
        %v1144 = vunpack.c.l.b16 %v1040
        %v1145 = vunpack.c.l.b16 %v1041
        %v1146 = vunpack.c.l.b16 %v1042
        %v1147 = vunpack.c.l.b16 %v1043
        %v1148 = vunpack.c.l.b16 %v1044
        %v1149 = vunpack.c.l.b16 %v1045
        %v1150 = vunpack.c.l.b16 %v1046
        %v1151 = vunpack.c.l.b16 %v1047
        %v1152 = vunpack.c.l.b16 %v1048
        %v1153 = vunpack.c.l.b16 %v1049
        %v1154 = vunpack.c.l.b16 %v1050
        %v1155 = vunpack.c.l.b16 %v1051
        %v1156 = vunpack.c.l.b16 %v1052
        %v1157 = vunpack.c.l.b16 %v1053
        %v1158 = vunpack.c.l.b16 %v1054
        %v1159 = vunpack.c.l.b16 %v1055
        %v1160 = vunpack.c.l.b16 %v1056
        %v1161 = vunpack.c.l.b16 %v1057
        %v1162 = vunpack.c.l.b16 %v1058
        %v1163 = vunpack.c.l.b16 %v1059
        %v1164 = vunpack.c.l.b16 %v1060
        %v1165 = vunpack.c.l.b16 %v1061
        %v1166 = vunpack.c.l.b16 %v1062
        %v1167 = vunpack.c.l.b16 %v1063
        %v1168 = vunpack.c.l.b16 %v1064
        %v1169 = vunpack.c.l.b16 %v1065
        %v1170 = vunpack.c.l.b16 %v1066
        %v1171 = vunpack.c.l.b16 %v1067
        %v1172 = vunpack.c.l.b16 %v1068
        %v1173 = vunpack.c.l.b16 %v1069
        %v1174 = vunpack.c.l.b16 %v1070
        %v1175 = vunpack.c.l.b16 %v1071
        %v1176 = vunpack.c.l.b16 %v1072
        %v1177 = vunpack.c.l.b16 %v1073
        %v1178 = vunpack.c.l.b16 %v1074
        %v1179 = vunpack.c.l.b16 %v1075
        %v1180 = vunpack.c.l.b16 %v1076
        %v1181 = vunpack.c.l.b16 %v1077
        %v1182 = vunpack.c.l.b16 %v1078
        %v1183 = vunpack.c.l.b16 %v1079
        %v1184 = vunpack.c.l.b16 %v1080
        %v1185 = vpack.c.b16 %v1138, %v1137
        %v1186 = vpack.c.b16 %v1140, %v1139
        %v1187 = vpack.c.b16 %v1142, %v1141
        %v1188 = vpack.c.b16 %v1144, %v1143
        %v1189 = vpack.c.b16 %v1146, %v1145
        %v1190 = vpack.c.b16 %v1148, %v1147
        %v1191 = vpack.c.b16 %v1150, %v1149
        %v1192 = vpack.c.b16 %v1152, %v1151
        %v1193 = vpack.c.b16 %v1154, %v1153
        %v1194 = vpack.c.b16 %v1156, %v1155
        %v1195 = vpack.c.b16 %v1158, %v1157
        %v1196 = vpack.c.b16 %v1160, %v1159
        %v1197 = vpack.c.b16 %v1162, %v1161
        %v1198 = vpack.c.b16 %v1164, %v1163
        %v1199 = vpack.c.b16 %v1166, %v1165
        %v1200 = vpack.c.b16 %v1168, %v1167
        %v1201 = vpack.c.b16 %v1170, %v1169
        %v1202 = vpack.c.b16 %v1172, %v1171
        %v1203 = vpack.c.b16 %v1174, %v1173
        %v1204 = vpack.c.b16 %v1176, %v1175
        %v1205 = vpack.c.b16 %v1178, %v1177
        %v1206 = vpack.c.b16 %v1180, %v1179
        %v1207 = vpack.c.b16 %v1182, %v1181
        %v1208 = vpack.c.b16 %v1184, %v1183
        %1233 = vmatprep.subr.bf16.mxu0 0
        %1234 = vmatpush1.bf16.msra.mxu0 %v1192
        %1235 = vmatprep.subr.bf16.mxu0 0
        %1236 = vmatpush1.bf16.msra.mxu0 %v1191
        %1237 = vmatprep.subr.bf16.mxu0 0
        %1238 = vmatpush1.bf16.msra.mxu0 %v1190
        %1239 = vmatprep.subr.bf16.mxu0 0
        %1240 = vmatpush1.bf16.msra.mxu0 %v1189
        %1241 = vmatprep.subr.bf16.mxu0 0
        %1242 = vmatpush1.bf16.msra.mxu0 %v1188
        %1243 = vmatprep.subr.bf16.mxu0 0
        %1244 = vmatpush1.bf16.msra.mxu0 %v1187
        %1245 = vmatprep.subr.bf16.mxu0 0
        %1246 = vmatpush1.bf16.msra.mxu0 %v1186
        %1247 = vmatprep.subr.bf16.mxu0 0
        %1248 = vmatpush1.bf16.msra.mxu0 %v1185
        %1249 = vmatprep.subr.bf16.mxu0 0
        %1250 = vmatpush2.bf16.msra.mxu0 %v1200
        %1251 = vmatprep.subr.bf16.mxu0 0
        %1252 = vmatpush2.bf16.msra.mxu0 %v1199
        %1253 = vmatprep.subr.bf16.mxu0 0
        %1254 = vmatpush2.bf16.msra.mxu0 %v1198
        %1255 = vmatprep.subr.bf16.mxu0 0
        %1256 = vmatpush2.bf16.msra.mxu0 %v1197
        %1257 = vmatprep.subr.bf16.mxu0 0
        %1258 = vmatpush2.bf16.msra.mxu0 %v1196
        %1259 = vmatprep.subr.bf16.mxu0 0
        %1260 = vmatpush2.bf16.msra.mxu0 %v1195
        %1261 = vmatprep.subr.bf16.mxu0 0
        %1262 = vmatpush2.bf16.msra.mxu0 %v1194
        %1263 = vmatprep.subr.bf16.mxu0 0
        %1264 = vmatpush2.bf16.msra.mxu0 %v1193
        %1265 = vmatprep.mubr.bf16.mxu0 %v1016
        %1266 = vmatmul.mubr.bf16.gmra.mxu0 %v1004
        %v1267 = vpop.f32.mrf.mxu0
        %v1268 = vadd.f32 %v1087, %v1267
        %v1269 = vpop.f32.mrf.mxu0
        %v1270 = vpop.f32.mrf.mxu0
        %v1271 = vadd.f32 %v1087, %v1270
        %v1272 = vpop.f32.mrf.mxu0
        %1273 = vmatprep.mubr.bf16.mxu0 %v1017
        %1274 = vmatmul.mubr.bf16.gmra.mxu0 %v1005
        %v1275 = vpop.f32.mrf.mxu0
        %v1276 = vadd.f32 %v1087, %v1275
        %v1277 = vpop.f32.mrf.mxu0
        %v1278 = vpop.f32.mrf.mxu0
        %v1279 = vadd.f32 %v1087, %v1278
        %v1280 = vpop.f32.mrf.mxu0
        %1281 = vmatprep.mubr.bf16.mxu0 %v1018
        %1282 = vmatmul.mubr.bf16.gmra.mxu0 %v1006
        %v1283 = vpop.f32.mrf.mxu0
        %v1284 = vadd.f32 %v1087, %v1283
        %v1285 = vpop.f32.mrf.mxu0
        %v1286 = vpop.f32.mrf.mxu0
        %v1287 = vadd.f32 %v1087, %v1286
        %v1288 = vpop.f32.mrf.mxu0
        %1289 = vmatprep.mubr.bf16.mxu0 %v1019
        %1290 = vmatmul.mubr.bf16.gmra.mxu0 %v1007
        %v1291 = vpop.f32.mrf.mxu0
        %v1292 = vadd.f32 %v1087, %v1291
        %v1293 = vpop.f32.mrf.mxu0
        %v1294 = vpop.f32.mrf.mxu0
        %v1295 = vadd.f32 %v1087, %v1294
        %v1296 = vpop.f32.mrf.mxu0
        %1297 = vdwg.mxu0
        %1298 = vmatprep.subr.bf16.mxu0 0
        %1299 = vmatpush1.bf16.msra.mxu0 %v1208
        %1300 = vmatprep.subr.bf16.mxu0 0
        %1301 = vmatpush1.bf16.msra.mxu0 %v1207
        %1302 = vmatprep.subr.bf16.mxu0 0
        %1303 = vmatpush1.bf16.msra.mxu0 %v1206
        %1304 = vmatprep.subr.bf16.mxu0 0
        %1305 = vmatpush1.bf16.msra.mxu0 %v1205
        %1306 = vmatprep.subr.bf16.mxu0 0
        %1307 = vmatpush1.bf16.msra.mxu0 %v1204
        %1308 = vmatprep.subr.bf16.mxu0 0
        %1309 = vmatpush1.bf16.msra.mxu0 %v1203
        %1310 = vmatprep.subr.bf16.mxu0 0
        %1311 = vmatpush1.bf16.msra.mxu0 %v1202
        %1312 = vmatprep.subr.bf16.mxu0 0
        %1313 = vmatpush1.bf16.msra.mxu0 %v1201
        %1314 = vmatprep.subr.bf16.mxu0 0
        %1315 = vmatpush2.bf16.msra.mxu0 0
        %1316 = vmatprep.subr.bf16.mxu0 0
        %1317 = vmatpush2.bf16.msra.mxu0 0
        %1318 = vmatprep.subr.bf16.mxu0 0
        %1319 = vmatpush2.bf16.msra.mxu0 0
        %1320 = vmatprep.subr.bf16.mxu0 0
        %1321 = vmatpush2.bf16.msra.mxu0 0
        %1322 = vmatprep.subr.bf16.mxu0 0
        %1323 = vmatpush2.bf16.msra.mxu0 0
        %1324 = vmatprep.subr.bf16.mxu0 0
        %1325 = vmatpush2.bf16.msra.mxu0 0
        %1326 = vmatprep.subr.bf16.mxu0 0
        %1327 = vmatpush2.bf16.msra.mxu0 0
        %1328 = vmatprep.subr.bf16.mxu0 0
        %1329 = vmatpush2.bf16.msra.mxu0 0
        %1330 = vmatprep.mubr.bf16.mxu0 0
        %1331 = vmatmul.mubr.bf16.gmra.mxu0 %v1028
        %v1332 = vpop.f32.mrf.mxu0
        %v1333 = vadd.f32 %v1268, %v1332
        %v1334 = vpop.f32.mrf.mxu0
        %v1335 = vpop.f32.mrf.mxu0
        %v1336 = vadd.f32 %v1271, %v1335
        %v1337 = vpop.f32.mrf.mxu0
        %1338 = vmatprep.mubr.bf16.mxu0 0
        %1339 = vmatmul.mubr.bf16.gmra.mxu0 %v1029
        %v1340 = vpop.f32.mrf.mxu0
        %v1341 = vadd.f32 %v1276, %v1340
        %v1342 = vpop.f32.mrf.mxu0
        %v1343 = vpop.f32.mrf.mxu0
        %v1344 = vadd.f32 %v1279, %v1343
        %v1345 = vpop.f32.mrf.mxu0
        %1346 = vmatprep.mubr.bf16.mxu0 0
        %1347 = vmatmul.mubr.bf16.gmra.mxu0 %v1030
        %v1348 = vpop.f32.mrf.mxu0
        %v1349 = vadd.f32 %v1284, %v1348
        %v1350 = vpop.f32.mrf.mxu0
        %v1351 = vpop.f32.mrf.mxu0
        %v1352 = vadd.f32 %v1287, %v1351
        %v1353 = vpop.f32.mrf.mxu0
        %1354 = vmatprep.mubr.bf16.mxu0 0
        %1355 = vmatmul.mubr.bf16.gmra.mxu0 %v1031
        %v1356 = vpop.f32.mrf.mxu0
        %v1357 = vadd.f32 %v1292, %v1356
        %v1358 = vpop.f32.mrf.mxu0
        %v1359 = vpop.f32.mrf.mxu0
        %v1360 = vadd.f32 %v1295, %v1359
        %v1361 = vpop.f32.mrf.mxu0
        %1362 = vdwg.mxu0
        %v1363 = vmax.f32 %v1333, 0.0
        %v1364 = vmax.f32 %v1336, 0.0
        %v1365 = vmax.f32 %v1341, 0.0
        %v1366 = vmax.f32 %v1344, 0.0
        %v1367 = vmax.f32 %v1349, 0.0
        %v1368 = vmax.f32 %v1352, 0.0
        %v1369 = vmax.f32 %v1357, 0.0
        %v1370 = vmax.f32 %v1360, 0.0
        %1371 = vst [vmem:[#allocation2 + $0x20] sm:$0xff] %v1363
        %1372 = vst [vmem:[#allocation2 + $0x28] sm:$0xff] %v1364
        %1373 = vst [vmem:[#allocation2 + $0x50] sm:$0xff] %v1365
        %1374 = vst [vmem:[#allocation2 + $0x58] sm:$0xff] %v1366
        %1375 = vst [vmem:[#allocation2 + $0x80] sm:$0xff] %v1367
        %1376 = vst [vmem:[#allocation2 + $0x88] sm:$0xff] %v1368
        %1377 = vst [vmem:[#allocation2 + $0xb0] sm:$0xff] %v1369
        %1378 = vst [vmem:[#allocation2 + $0xb8] sm:$0xff] %v1370
        %v1379 = vld [vmem:[#allocation2 + $0x10] sm:$0xff]
        %v1380 = vld [vmem:[#allocation2 + $0x18] sm:$0xff]
        %v1381 = vld [vmem:[#allocation2 + $0x40] sm:$0xff]
        %v1382 = vld [vmem:[#allocation2 + $0x48] sm:$0xff]
        %v1383 = vld [vmem:[#allocation2 + $0x70] sm:$0xff]
        %v1384 = vld [vmem:[#allocation2 + $0x78] sm:$0xff]
        %v1385 = vld [vmem:[#allocation2 + $0xa0] sm:$0xff]
        %v1386 = vld [vmem:[#allocation2 + $0xa8] sm:$0xff]
        %v1387 = vpack.c.bf16 %v1380, %v1379
        %v1388 = vpack.c.bf16 %v1382, %v1381
        %v1389 = vpack.c.bf16 %v1384, %v1383
        %v1390 = vpack.c.bf16 %v1386, %v1385
        %v1391 = vld [vmem:[#allocation2 + $0x20] sm:$0xff]
        %v1392 = vld [vmem:[#allocation2 + $0x50] sm:$0xff]
        %v1393 = vld [vmem:[#allocation2 + $0x80] sm:$0xff]
        %v1394 = vld [vmem:[#allocation2 + $0xb0] sm:$0xff]
        %v1395 = vpack.c.bf16 %v1391, %v1380
        %v1396 = vpack.c.bf16 %v1392, %v1382
        %v1397 = vpack.c.bf16 %v1393, %v1384
        %v1398 = vpack.c.bf16 %v1394, %v1386
        %v1399 = vld [vmem:[#allocation2 + $0x20] sm:$0xff]
        %v1400 = vld [vmem:[#allocation2 + $0x28] sm:$0xff]
        %v1401 = vld [vmem:[#allocation2 + $0x50] sm:$0xff]
        %v1402 = vld [vmem:[#allocation2 + $0x58] sm:$0xff]
        %v1403 = vld [vmem:[#allocation2 + $0x80] sm:$0xff]
        %v1404 = vld [vmem:[#allocation2 + $0x88] sm:$0xff]
        %v1405 = vld [vmem:[#allocation2 + $0xb0] sm:$0xff]
        %v1406 = vld [vmem:[#allocation2 + $0xb8] sm:$0xff]
        %v1407 = vpack.c.bf16 %v1400, %v1399
        %v1408 = vpack.c.bf16 %v1402, %v1401
        %v1409 = vpack.c.bf16 %v1404, %v1403
        %v1410 = vpack.c.bf16 %v1406, %v1405
        %s1411 = scalar_lea.vmem [#allocation3], 576
        %v1412 = vld [vmem:[%s1411] sm:$0xf]
        %v1413 = vld [vmem:[%s1411 + $0x4] sm:$0xf]
        %v1414 = vld [vmem:[%s1411 + $0x8] sm:$0xf]
        %v1415 = vld [vmem:[%s1411 + $0xc] sm:$0xf]
        %v1416 = vld [vmem:[%s1411 + $0x10] sm:$0xf]
        %v1417 = vld [vmem:[%s1411 + $0x14] sm:$0xf]
        %v1418 = vld [vmem:[%s1411 + $0x18] sm:$0xf]
        %v1419 = vld [vmem:[%s1411 + $0x1c] sm:$0xf]
        %v1420 = vld [vmem:[%s1411 + $0x20] sm:$0xf]
        %v1421 = vld [vmem:[%s1411 + $0x24] sm:$0xf]
        %v1422 = vld [vmem:[%s1411 + $0x28] sm:$0xf]
        %v1423 = vld [vmem:[%s1411 + $0x2c] sm:$0xf]
        %v1424 = vld [vmem:[%s1411 + $0x30] sm:$0xf]
        %v1425 = vld [vmem:[%s1411 + $0x34] sm:$0xf]
        %v1426 = vld [vmem:[%s1411 + $0x38] sm:$0xf]
        %v1427 = vld [vmem:[%s1411 + $0x3c] sm:$0xf]
        %v1428 = vld [vmem:[%s1411 + $0x40] sm:$0xf]
        %v1429 = vld [vmem:[%s1411 + $0x44] sm:$0xf]
        %v1430 = vld [vmem:[%s1411 + $0x48] sm:$0xf]
        %v1431 = vld [vmem:[%s1411 + $0x4c] sm:$0xf]
        %v1432 = vld [vmem:[%s1411 + $0x50] sm:$0xf]
        %v1433 = vld [vmem:[%s1411 + $0x54] sm:$0xf]
        %v1434 = vld [vmem:[%s1411 + $0x58] sm:$0xf]
        %v1435 = vld [vmem:[%s1411 + $0x5c] sm:$0xf]
        %v1436 = vld [vmem:[%s1411 + $0x60] sm:$0xf]
        %v1437 = vld [vmem:[%s1411 + $0x64] sm:$0xf]
        %v1438 = vld [vmem:[%s1411 + $0x68] sm:$0xf]
        %v1439 = vld [vmem:[%s1411 + $0x6c] sm:$0xf]
        %v1440 = vld [vmem:[%s1411 + $0x70] sm:$0xf]
        %v1441 = vld [vmem:[%s1411 + $0x74] sm:$0xf]
        %v1442 = vld [vmem:[%s1411 + $0x78] sm:$0xf]
        %v1443 = vld [vmem:[%s1411 + $0x7c] sm:$0xf]
        %v1444 = vld [vmem:[%s1411 + $0x80] sm:$0xf]
        %v1445 = vld [vmem:[%s1411 + $0x84] sm:$0xf]
        %v1446 = vld [vmem:[%s1411 + $0x88] sm:$0xf]
        %v1447 = vld [vmem:[%s1411 + $0x8c] sm:$0xf]
        %v1448 = vld [vmem:[%s1411 + $0x90] sm:$0xf]
        %v1449 = vld [vmem:[%s1411 + $0x94] sm:$0xf]
        %v1450 = vld [vmem:[%s1411 + $0x98] sm:$0xf]
        %v1451 = vld [vmem:[%s1411 + $0x9c] sm:$0xf]
        %v1452 = vld [vmem:[%s1411 + $0xa0] sm:$0xf]
        %v1453 = vld [vmem:[%s1411 + $0xa4] sm:$0xf]
        %v1454 = vld [vmem:[%s1411 + $0xa8] sm:$0xf]
        %v1455 = vld [vmem:[%s1411 + $0xac] sm:$0xf]
        %v1456 = vld [vmem:[%s1411 + $0xb0] sm:$0xf]
        %v1457 = vld [vmem:[%s1411 + $0xb4] sm:$0xf]
        %v1458 = vld [vmem:[%s1411 + $0xb8] sm:$0xf]
        %v1459 = vld [vmem:[%s1411 + $0xbc] sm:$0xf]
        %s1460 = scalar_lea.vmem %s2, 3
        %v1461 = vld [vmem:[%s1460] sm:$0x1]
        %v1463 = vlaneseq
        %v1464 = vshrl.u32 %v1463, 7
        %v1465 = vsub.s32 0, %v1464
        %v1466 = vrot.slane %v1461, %v1465
        %v1516 = vunpack.c.l.b16 %v1412
        %v1517 = vunpack.c.l.b16 %v1413
        %v1518 = vunpack.c.l.b16 %v1414
        %v1519 = vunpack.c.l.b16 %v1415
        %v1520 = vunpack.c.l.b16 %v1416
        %v1521 = vunpack.c.l.b16 %v1417
        %v1522 = vunpack.c.l.b16 %v1418
        %v1523 = vunpack.c.l.b16 %v1419
        %v1524 = vunpack.c.l.b16 %v1420
        %v1525 = vunpack.c.l.b16 %v1421
        %v1526 = vunpack.c.l.b16 %v1422
        %v1527 = vunpack.c.l.b16 %v1423
        %v1528 = vunpack.c.l.b16 %v1424
        %v1529 = vunpack.c.l.b16 %v1425
        %v1530 = vunpack.c.l.b16 %v1426
        %v1531 = vunpack.c.l.b16 %v1427
        %v1532 = vunpack.c.l.b16 %v1428
        %v1533 = vunpack.c.l.b16 %v1429
        %v1534 = vunpack.c.l.b16 %v1430
        %v1535 = vunpack.c.l.b16 %v1431
        %v1536 = vunpack.c.l.b16 %v1432
        %v1537 = vunpack.c.l.b16 %v1433
        %v1538 = vunpack.c.l.b16 %v1434
        %v1539 = vunpack.c.l.b16 %v1435
        %v1540 = vunpack.c.l.b16 %v1436
        %v1541 = vunpack.c.l.b16 %v1437
        %v1542 = vunpack.c.l.b16 %v1438
        %v1543 = vunpack.c.l.b16 %v1439
        %v1544 = vunpack.c.l.b16 %v1440
        %v1545 = vunpack.c.l.b16 %v1441
        %v1546 = vunpack.c.l.b16 %v1442
        %v1547 = vunpack.c.l.b16 %v1443
        %v1548 = vunpack.c.l.b16 %v1444
        %v1549 = vunpack.c.l.b16 %v1445
        %v1550 = vunpack.c.l.b16 %v1446
        %v1551 = vunpack.c.l.b16 %v1447
        %v1552 = vunpack.c.l.b16 %v1448
        %v1553 = vunpack.c.l.b16 %v1449
        %v1554 = vunpack.c.l.b16 %v1450
        %v1555 = vunpack.c.l.b16 %v1451
        %v1556 = vunpack.c.l.b16 %v1452
        %v1557 = vunpack.c.l.b16 %v1453
        %v1558 = vunpack.c.l.b16 %v1454
        %v1559 = vunpack.c.l.b16 %v1455
        %v1560 = vunpack.c.l.b16 %v1456
        %v1561 = vunpack.c.l.b16 %v1457
        %v1562 = vunpack.c.l.b16 %v1458
        %v1563 = vunpack.c.l.b16 %v1459
        %v1564 = vpack.c.b16 %v1517, %v1516
        %v1565 = vpack.c.b16 %v1519, %v1518
        %v1566 = vpack.c.b16 %v1521, %v1520
        %v1567 = vpack.c.b16 %v1523, %v1522
        %v1568 = vpack.c.b16 %v1525, %v1524
        %v1569 = vpack.c.b16 %v1527, %v1526
        %v1570 = vpack.c.b16 %v1529, %v1528
        %v1571 = vpack.c.b16 %v1531, %v1530
        %v1572 = vpack.c.b16 %v1533, %v1532
        %v1573 = vpack.c.b16 %v1535, %v1534
        %v1574 = vpack.c.b16 %v1537, %v1536
        %v1575 = vpack.c.b16 %v1539, %v1538
        %v1576 = vpack.c.b16 %v1541, %v1540
        %v1577 = vpack.c.b16 %v1543, %v1542
        %v1578 = vpack.c.b16 %v1545, %v1544
        %v1579 = vpack.c.b16 %v1547, %v1546
        %v1580 = vpack.c.b16 %v1549, %v1548
        %v1581 = vpack.c.b16 %v1551, %v1550
        %v1582 = vpack.c.b16 %v1553, %v1552
        %v1583 = vpack.c.b16 %v1555, %v1554
        %v1584 = vpack.c.b16 %v1557, %v1556
        %v1585 = vpack.c.b16 %v1559, %v1558
        %v1586 = vpack.c.b16 %v1561, %v1560
        %v1587 = vpack.c.b16 %v1563, %v1562
        %1612 = vmatprep.subr.bf16.mxu0 0
        %1613 = vmatpush1.bf16.msra.mxu0 %v1571
        %1614 = vmatprep.subr.bf16.mxu0 0
        %1615 = vmatpush1.bf16.msra.mxu0 %v1570
        %1616 = vmatprep.subr.bf16.mxu0 0
        %1617 = vmatpush1.bf16.msra.mxu0 %v1569
        %1618 = vmatprep.subr.bf16.mxu0 0
        %1619 = vmatpush1.bf16.msra.mxu0 %v1568
        %1620 = vmatprep.subr.bf16.mxu0 0
        %1621 = vmatpush1.bf16.msra.mxu0 %v1567
        %1622 = vmatprep.subr.bf16.mxu0 0
        %1623 = vmatpush1.bf16.msra.mxu0 %v1566
        %1624 = vmatprep.subr.bf16.mxu0 0
        %1625 = vmatpush1.bf16.msra.mxu0 %v1565
        %1626 = vmatprep.subr.bf16.mxu0 0
        %1627 = vmatpush1.bf16.msra.mxu0 %v1564
        %1628 = vmatprep.subr.bf16.mxu0 0
        %1629 = vmatpush2.bf16.msra.mxu0 %v1579
        %1630 = vmatprep.subr.bf16.mxu0 0
        %1631 = vmatpush2.bf16.msra.mxu0 %v1578
        %1632 = vmatprep.subr.bf16.mxu0 0
        %1633 = vmatpush2.bf16.msra.mxu0 %v1577
        %1634 = vmatprep.subr.bf16.mxu0 0
        %1635 = vmatpush2.bf16.msra.mxu0 %v1576
        %1636 = vmatprep.subr.bf16.mxu0 0
        %1637 = vmatpush2.bf16.msra.mxu0 %v1575
        %1638 = vmatprep.subr.bf16.mxu0 0
        %1639 = vmatpush2.bf16.msra.mxu0 %v1574
        %1640 = vmatprep.subr.bf16.mxu0 0
        %1641 = vmatpush2.bf16.msra.mxu0 %v1573
        %1642 = vmatprep.subr.bf16.mxu0 0
        %1643 = vmatpush2.bf16.msra.mxu0 %v1572
        %1644 = vmatprep.mubr.bf16.mxu0 %v1395
        %1645 = vmatmul.mubr.bf16.gmra.mxu0 %v1387
        %v1646 = vpop.f32.mrf.mxu0
        %v1647 = vadd.f32 %v1466, %v1646
        %v1648 = vpop.f32.mrf.mxu0
        %v1649 = vpop.f32.mrf.mxu0
        %v1650 = vadd.f32 %v1466, %v1649
        %v1651 = vpop.f32.mrf.mxu0
        %1652 = vmatprep.mubr.bf16.mxu0 %v1396
        %1653 = vmatmul.mubr.bf16.gmra.mxu0 %v1388
        %v1654 = vpop.f32.mrf.mxu0
        %v1655 = vadd.f32 %v1466, %v1654
        %v1656 = vpop.f32.mrf.mxu0
        %v1657 = vpop.f32.mrf.mxu0
        %v1658 = vadd.f32 %v1466, %v1657
        %v1659 = vpop.f32.mrf.mxu0
        %1660 = vmatprep.mubr.bf16.mxu0 %v1397
        %1661 = vmatmul.mubr.bf16.gmra.mxu0 %v1389
        %v1662 = vpop.f32.mrf.mxu0
        %v1663 = vadd.f32 %v1466, %v1662
        %v1664 = vpop.f32.mrf.mxu0
        %v1665 = vpop.f32.mrf.mxu0
        %v1666 = vadd.f32 %v1466, %v1665
        %v1667 = vpop.f32.mrf.mxu0
        %1668 = vmatprep.mubr.bf16.mxu0 %v1398
        %1669 = vmatmul.mubr.bf16.gmra.mxu0 %v1390
        %v1670 = vpop.f32.mrf.mxu0
        %v1671 = vadd.f32 %v1466, %v1670
        %v1672 = vpop.f32.mrf.mxu0
        %v1673 = vpop.f32.mrf.mxu0
        %v1674 = vadd.f32 %v1466, %v1673
        %v1675 = vpop.f32.mrf.mxu0
        %1676 = vdwg.mxu0
        %1677 = vmatprep.subr.bf16.mxu0 0
        %1678 = vmatpush1.bf16.msra.mxu0 %v1587
        %1679 = vmatprep.subr.bf16.mxu0 0
        %1680 = vmatpush1.bf16.msra.mxu0 %v1586
        %1681 = vmatprep.subr.bf16.mxu0 0
        %1682 = vmatpush1.bf16.msra.mxu0 %v1585
        %1683 = vmatprep.subr.bf16.mxu0 0
        %1684 = vmatpush1.bf16.msra.mxu0 %v1584
        %1685 = vmatprep.subr.bf16.mxu0 0
        %1686 = vmatpush1.bf16.msra.mxu0 %v1583
        %1687 = vmatprep.subr.bf16.mxu0 0
        %1688 = vmatpush1.bf16.msra.mxu0 %v1582
        %1689 = vmatprep.subr.bf16.mxu0 0
        %1690 = vmatpush1.bf16.msra.mxu0 %v1581
        %1691 = vmatprep.subr.bf16.mxu0 0
        %1692 = vmatpush1.bf16.msra.mxu0 %v1580
        %1693 = vmatprep.subr.bf16.mxu0 0
        %1694 = vmatpush2.bf16.msra.mxu0 0
        %1695 = vmatprep.subr.bf16.mxu0 0
        %1696 = vmatpush2.bf16.msra.mxu0 0
        %1697 = vmatprep.subr.bf16.mxu0 0
        %1698 = vmatpush2.bf16.msra.mxu0 0
        %1699 = vmatprep.subr.bf16.mxu0 0
        %1700 = vmatpush2.bf16.msra.mxu0 0
        %1701 = vmatprep.subr.bf16.mxu0 0
        %1702 = vmatpush2.bf16.msra.mxu0 0
        %1703 = vmatprep.subr.bf16.mxu0 0
        %1704 = vmatpush2.bf16.msra.mxu0 0
        %1705 = vmatprep.subr.bf16.mxu0 0
        %1706 = vmatpush2.bf16.msra.mxu0 0
        %1707 = vmatprep.subr.bf16.mxu0 0
        %1708 = vmatpush2.bf16.msra.mxu0 0
        %1709 = vmatprep.mubr.bf16.mxu0 0
        %1710 = vmatmul.mubr.bf16.gmra.mxu0 %v1407
        %v1711 = vpop.f32.mrf.mxu0
        %v1712 = vadd.f32 %v1647, %v1711
        %v1713 = vpop.f32.mrf.mxu0
        %v1714 = vpop.f32.mrf.mxu0
        %v1715 = vadd.f32 %v1650, %v1714
        %v1716 = vpop.f32.mrf.mxu0
        %1717 = vmatprep.mubr.bf16.mxu0 0
        %1718 = vmatmul.mubr.bf16.gmra.mxu0 %v1408
        %v1719 = vpop.f32.mrf.mxu0
        %v1720 = vadd.f32 %v1655, %v1719
        %v1721 = vpop.f32.mrf.mxu0
        %v1722 = vpop.f32.mrf.mxu0
        %v1723 = vadd.f32 %v1658, %v1722
        %v1724 = vpop.f32.mrf.mxu0
        %1725 = vmatprep.mubr.bf16.mxu0 0
        %1726 = vmatmul.mubr.bf16.gmra.mxu0 %v1409
        %v1727 = vpop.f32.mrf.mxu0
        %v1728 = vadd.f32 %v1663, %v1727
        %v1729 = vpop.f32.mrf.mxu0
        %v1730 = vpop.f32.mrf.mxu0
        %v1731 = vadd.f32 %v1666, %v1730
        %v1732 = vpop.f32.mrf.mxu0
        %1733 = vmatprep.mubr.bf16.mxu0 0
        %1734 = vmatmul.mubr.bf16.gmra.mxu0 %v1410
        %v1735 = vpop.f32.mrf.mxu0
        %v1736 = vadd.f32 %v1671, %v1735
        %v1737 = vpop.f32.mrf.mxu0
        %v1738 = vpop.f32.mrf.mxu0
        %v1739 = vadd.f32 %v1674, %v1738
        %v1740 = vpop.f32.mrf.mxu0
        %1741 = vdwg.mxu0
        %v1742 = vmax.f32 %v1712, 0.0
        %v1743 = vmax.f32 %v1715, 0.0
        %v1744 = vmax.f32 %v1720, 0.0
        %v1745 = vmax.f32 %v1723, 0.0
        %v1746 = vmax.f32 %v1728, 0.0
        %v1747 = vmax.f32 %v1731, 0.0
        %v1748 = vmax.f32 %v1736, 0.0
        %v1749 = vmax.f32 %v1739, 0.0
        %1750 = vst [vmem:[#allocation2 + $0x20] sm:$0xff] %v1742
        %1751 = vst [vmem:[#allocation2 + $0x28] sm:$0xff] %v1743
        %1752 = vst [vmem:[#allocation2 + $0x50] sm:$0xff] %v1744
        %1753 = vst [vmem:[#allocation2 + $0x58] sm:$0xff] %v1745
        %1754 = vst [vmem:[#allocation2 + $0x80] sm:$0xff] %v1746
        %1755 = vst [vmem:[#allocation2 + $0x88] sm:$0xff] %v1747
        %1756 = vst [vmem:[#allocation2 + $0xb0] sm:$0xff] %v1748
        %1757 = vst [vmem:[#allocation2 + $0xb8] sm:$0xff] %v1749
        %v1758 = vld [vmem:[#allocation2] sm:$0xff]
        %v1759 = vld [vmem:[#allocation2 + $0x8] sm:$0xff]
        %v1760 = vld [vmem:[#allocation2 + $0x30] sm:$0xff]
        %v1761 = vld [vmem:[#allocation2 + $0x38] sm:$0xff]
        %v1762 = vld [vmem:[#allocation2 + $0x60] sm:$0xff]
        %v1763 = vld [vmem:[#allocation2 + $0x68] sm:$0xff]
        %v1764 = vld [vmem:[#allocation2 + $0x90] sm:$0xff]
        %v1765 = vld [vmem:[#allocation2 + $0x98] sm:$0xff]
        %v1766 = vpack.c.bf16 %v1759, %v1758
        %v1767 = vpack.c.bf16 %v1761, %v1760
        %v1768 = vpack.c.bf16 %v1763, %v1762
        %v1769 = vpack.c.bf16 %v1765, %v1764
        %v1770 = vld [vmem:[#allocation2 + $0x10] sm:$0xff]
        %v1771 = vld [vmem:[#allocation2 + $0x18] sm:$0xff]
        %v1772 = vld [vmem:[#allocation2 + $0x40] sm:$0xff]
        %v1773 = vld [vmem:[#allocation2 + $0x48] sm:$0xff]
        %v1774 = vld [vmem:[#allocation2 + $0x70] sm:$0xff]
        %v1775 = vld [vmem:[#allocation2 + $0x78] sm:$0xff]
        %v1776 = vld [vmem:[#allocation2 + $0xa0] sm:$0xff]
        %v1777 = vld [vmem:[#allocation2 + $0xa8] sm:$0xff]
        %v1778 = vpack.c.bf16 %v1771, %v1770
        %v1779 = vpack.c.bf16 %v1773, %v1772
        %v1780 = vpack.c.bf16 %v1775, %v1774
        %v1781 = vpack.c.bf16 %v1777, %v1776
        %v1782 = vld [vmem:[#allocation2 + $0x20] sm:$0xff]
        %v1783 = vld [vmem:[#allocation2 + $0x28] sm:$0xff]
        %v1784 = vld [vmem:[#allocation2 + $0x50] sm:$0xff]
        %v1785 = vld [vmem:[#allocation2 + $0x58] sm:$0xff]
        %v1786 = vld [vmem:[#allocation2 + $0x80] sm:$0xff]
        %v1787 = vld [vmem:[#allocation2 + $0x88] sm:$0xff]
        %v1788 = vld [vmem:[#allocation2 + $0xb0] sm:$0xff]
        %v1789 = vld [vmem:[#allocation2 + $0xb8] sm:$0xff]
        %v1790 = vpack.c.bf16 %v1783, %v1782
        %v1791 = vpack.c.bf16 %v1785, %v1784
        %v1792 = vpack.c.bf16 %v1787, %v1786
        %v1793 = vpack.c.bf16 %v1789, %v1788
        %s1794 = scalar_lea.vmem [#allocation3], 768
        %v1795 = vld [vmem:[%s1794] sm:$0xf]
        %v1796 = vld [vmem:[%s1794 + $0x4] sm:$0xf]
        %v1797 = vld [vmem:[%s1794 + $0x8] sm:$0xf]
        %v1798 = vld [vmem:[%s1794 + $0xc] sm:$0xf]
        %v1799 = vld [vmem:[%s1794 + $0x10] sm:$0xf]
        %v1800 = vld [vmem:[%s1794 + $0x14] sm:$0xf]
        %v1801 = vld [vmem:[%s1794 + $0x18] sm:$0xf]
        %v1802 = vld [vmem:[%s1794 + $0x1c] sm:$0xf]
        %v1803 = vld [vmem:[%s1794 + $0x20] sm:$0xf]
        %v1804 = vld [vmem:[%s1794 + $0x24] sm:$0xf]
        %v1805 = vld [vmem:[%s1794 + $0x28] sm:$0xf]
        %v1806 = vld [vmem:[%s1794 + $0x2c] sm:$0xf]
        %v1807 = vld [vmem:[%s1794 + $0x30] sm:$0xf]
        %v1808 = vld [vmem:[%s1794 + $0x34] sm:$0xf]
        %v1809 = vld [vmem:[%s1794 + $0x38] sm:$0xf]
        %v1810 = vld [vmem:[%s1794 + $0x3c] sm:$0xf]
        %v1811 = vld [vmem:[%s1794 + $0x40] sm:$0xf]
        %v1812 = vld [vmem:[%s1794 + $0x44] sm:$0xf]
        %v1813 = vld [vmem:[%s1794 + $0x48] sm:$0xf]
        %v1814 = vld [vmem:[%s1794 + $0x4c] sm:$0xf]
        %v1815 = vld [vmem:[%s1794 + $0x50] sm:$0xf]
        %v1816 = vld [vmem:[%s1794 + $0x54] sm:$0xf]
        %v1817 = vld [vmem:[%s1794 + $0x58] sm:$0xf]
        %v1818 = vld [vmem:[%s1794 + $0x5c] sm:$0xf]
        %v1819 = vld [vmem:[%s1794 + $0x60] sm:$0xf]
        %v1820 = vld [vmem:[%s1794 + $0x64] sm:$0xf]
        %v1821 = vld [vmem:[%s1794 + $0x68] sm:$0xf]
        %v1822 = vld [vmem:[%s1794 + $0x6c] sm:$0xf]
        %v1823 = vld [vmem:[%s1794 + $0x70] sm:$0xf]
        %v1824 = vld [vmem:[%s1794 + $0x74] sm:$0xf]
        %v1825 = vld [vmem:[%s1794 + $0x78] sm:$0xf]
        %v1826 = vld [vmem:[%s1794 + $0x7c] sm:$0xf]
        %v1827 = vld [vmem:[%s1794 + $0x80] sm:$0xf]
        %v1828 = vld [vmem:[%s1794 + $0x84] sm:$0xf]
        %v1829 = vld [vmem:[%s1794 + $0x88] sm:$0xf]
        %v1830 = vld [vmem:[%s1794 + $0x8c] sm:$0xf]
        %v1831 = vld [vmem:[%s1794 + $0x90] sm:$0xf]
        %v1832 = vld [vmem:[%s1794 + $0x94] sm:$0xf]
        %v1833 = vld [vmem:[%s1794 + $0x98] sm:$0xf]
        %v1834 = vld [vmem:[%s1794 + $0x9c] sm:$0xf]
        %v1835 = vld [vmem:[%s1794 + $0xa0] sm:$0xf]
        %v1836 = vld [vmem:[%s1794 + $0xa4] sm:$0xf]
        %v1837 = vld [vmem:[%s1794 + $0xa8] sm:$0xf]
        %v1838 = vld [vmem:[%s1794 + $0xac] sm:$0xf]
        %v1839 = vld [vmem:[%s1794 + $0xb0] sm:$0xf]
        %v1840 = vld [vmem:[%s1794 + $0xb4] sm:$0xf]
        %v1841 = vld [vmem:[%s1794 + $0xb8] sm:$0xf]
        %v1842 = vld [vmem:[%s1794 + $0xbc] sm:$0xf]
        %s1843 = scalar_lea.vmem %s2, 4
        %v1844 = vld [vmem:[%s1843] sm:$0x1]
        %v1846 = vlaneseq
        %v1847 = vshrl.u32 %v1846, 7
        %v1848 = vsub.s32 0, %v1847
        %v1849 = vrot.slane %v1844, %v1848
        %v1899 = vunpack.c.l.b16 %v1795
        %v1900 = vunpack.c.l.b16 %v1796
        %v1901 = vunpack.c.l.b16 %v1797
        %v1902 = vunpack.c.l.b16 %v1798
        %v1903 = vunpack.c.l.b16 %v1799
        %v1904 = vunpack.c.l.b16 %v1800
        %v1905 = vunpack.c.l.b16 %v1801
        %v1906 = vunpack.c.l.b16 %v1802
        %v1907 = vunpack.c.l.b16 %v1803
        %v1908 = vunpack.c.l.b16 %v1804
        %v1909 = vunpack.c.l.b16 %v1805
        %v1910 = vunpack.c.l.b16 %v1806
        %v1911 = vunpack.c.l.b16 %v1807
        %v1912 = vunpack.c.l.b16 %v1808
        %v1913 = vunpack.c.l.b16 %v1809
        %v1914 = vunpack.c.l.b16 %v1810
        %v1915 = vunpack.c.l.b16 %v1811
        %v1916 = vunpack.c.l.b16 %v1812
        %v1917 = vunpack.c.l.b16 %v1813
        %v1918 = vunpack.c.l.b16 %v1814
        %v1919 = vunpack.c.l.b16 %v1815
        %v1920 = vunpack.c.l.b16 %v1816
        %v1921 = vunpack.c.l.b16 %v1817
        %v1922 = vunpack.c.l.b16 %v1818
        %v1923 = vunpack.c.l.b16 %v1819
        %v1924 = vunpack.c.l.b16 %v1820
        %v1925 = vunpack.c.l.b16 %v1821
        %v1926 = vunpack.c.l.b16 %v1822
        %v1927 = vunpack.c.l.b16 %v1823
        %v1928 = vunpack.c.l.b16 %v1824
        %v1929 = vunpack.c.l.b16 %v1825
        %v1930 = vunpack.c.l.b16 %v1826
        %v1931 = vunpack.c.l.b16 %v1827
        %v1932 = vunpack.c.l.b16 %v1828
        %v1933 = vunpack.c.l.b16 %v1829
        %v1934 = vunpack.c.l.b16 %v1830
        %v1935 = vunpack.c.l.b16 %v1831
        %v1936 = vunpack.c.l.b16 %v1832
        %v1937 = vunpack.c.l.b16 %v1833
        %v1938 = vunpack.c.l.b16 %v1834
        %v1939 = vunpack.c.l.b16 %v1835
        %v1940 = vunpack.c.l.b16 %v1836
        %v1941 = vunpack.c.l.b16 %v1837
        %v1942 = vunpack.c.l.b16 %v1838
        %v1943 = vunpack.c.l.b16 %v1839
        %v1944 = vunpack.c.l.b16 %v1840
        %v1945 = vunpack.c.l.b16 %v1841
        %v1946 = vunpack.c.l.b16 %v1842
        %v1947 = vpack.c.b16 %v1900, %v1899
        %v1948 = vpack.c.b16 %v1902, %v1901
        %v1949 = vpack.c.b16 %v1904, %v1903
        %v1950 = vpack.c.b16 %v1906, %v1905
        %v1951 = vpack.c.b16 %v1908, %v1907
        %v1952 = vpack.c.b16 %v1910, %v1909
        %v1953 = vpack.c.b16 %v1912, %v1911
        %v1954 = vpack.c.b16 %v1914, %v1913
        %v1955 = vpack.c.b16 %v1916, %v1915
        %v1956 = vpack.c.b16 %v1918, %v1917
        %v1957 = vpack.c.b16 %v1920, %v1919
        %v1958 = vpack.c.b16 %v1922, %v1921
        %v1959 = vpack.c.b16 %v1924, %v1923
        %v1960 = vpack.c.b16 %v1926, %v1925
        %v1961 = vpack.c.b16 %v1928, %v1927
        %v1962 = vpack.c.b16 %v1930, %v1929
        %v1963 = vpack.c.b16 %v1932, %v1931
        %v1964 = vpack.c.b16 %v1934, %v1933
        %v1965 = vpack.c.b16 %v1936, %v1935
        %v1966 = vpack.c.b16 %v1938, %v1937
        %v1967 = vpack.c.b16 %v1940, %v1939
        %v1968 = vpack.c.b16 %v1942, %v1941
        %v1969 = vpack.c.b16 %v1944, %v1943
        %v1970 = vpack.c.b16 %v1946, %v1945
        %1995 = vmatprep.subr.bf16.mxu0 0
        %1996 = vmatpush1.bf16.msra.mxu0 %v1954
        %1997 = vmatprep.subr.bf16.mxu0 0
        %1998 = vmatpush1.bf16.msra.mxu0 %v1953
        %1999 = vmatprep.subr.bf16.mxu0 0
        %2000 = vmatpush1.bf16.msra.mxu0 %v1952
        %2001 = vmatprep.subr.bf16.mxu0 0
        %2002 = vmatpush1.bf16.msra.mxu0 %v1951
        %2003 = vmatprep.subr.bf16.mxu0 0
        %2004 = vmatpush1.bf16.msra.mxu0 %v1950
        %2005 = vmatprep.subr.bf16.mxu0 0
        %2006 = vmatpush1.bf16.msra.mxu0 %v1949
        %2007 = vmatprep.subr.bf16.mxu0 0
        %2008 = vmatpush1.bf16.msra.mxu0 %v1948
        %2009 = vmatprep.subr.bf16.mxu0 0
        %2010 = vmatpush1.bf16.msra.mxu0 %v1947
        %2011 = vmatprep.subr.bf16.mxu0 0
        %2012 = vmatpush2.bf16.msra.mxu0 %v1962
        %2013 = vmatprep.subr.bf16.mxu0 0
        %2014 = vmatpush2.bf16.msra.mxu0 %v1961
        %2015 = vmatprep.subr.bf16.mxu0 0
        %2016 = vmatpush2.bf16.msra.mxu0 %v1960
        %2017 = vmatprep.subr.bf16.mxu0 0
        %2018 = vmatpush2.bf16.msra.mxu0 %v1959
        %2019 = vmatprep.subr.bf16.mxu0 0
        %2020 = vmatpush2.bf16.msra.mxu0 %v1958
        %2021 = vmatprep.subr.bf16.mxu0 0
        %2022 = vmatpush2.bf16.msra.mxu0 %v1957
        %2023 = vmatprep.subr.bf16.mxu0 0
        %2024 = vmatpush2.bf16.msra.mxu0 %v1956
        %2025 = vmatprep.subr.bf16.mxu0 0
        %2026 = vmatpush2.bf16.msra.mxu0 %v1955
        %2027 = vmatprep.mubr.bf16.mxu0 %v1778
        %2028 = vmatmul.mubr.bf16.gmra.mxu0 %v1766
        %v2029 = vpop.f32.mrf.mxu0
        %v2030 = vadd.f32 %v1849, %v2029
        %v2031 = vpop.f32.mrf.mxu0
        %v2032 = vpop.f32.mrf.mxu0
        %v2033 = vadd.f32 %v1849, %v2032
        %v2034 = vpop.f32.mrf.mxu0
        %2035 = vmatprep.mubr.bf16.mxu0 %v1779
        %2036 = vmatmul.mubr.bf16.gmra.mxu0 %v1767
        %v2037 = vpop.f32.mrf.mxu0
        %v2038 = vadd.f32 %v1849, %v2037
        %v2039 = vpop.f32.mrf.mxu0
        %v2040 = vpop.f32.mrf.mxu0
        %v2041 = vadd.f32 %v1849, %v2040
        %v2042 = vpop.f32.mrf.mxu0
        %2043 = vmatprep.mubr.bf16.mxu0 %v1780
        %2044 = vmatmul.mubr.bf16.gmra.mxu0 %v1768
        %v2045 = vpop.f32.mrf.mxu0
        %v2046 = vadd.f32 %v1849, %v2045
        %v2047 = vpop.f32.mrf.mxu0
        %v2048 = vpop.f32.mrf.mxu0
        %v2049 = vadd.f32 %v1849, %v2048
        %v2050 = vpop.f32.mrf.mxu0
        %2051 = vmatprep.mubr.bf16.mxu0 %v1781
        %2052 = vmatmul.mubr.bf16.gmra.mxu0 %v1769
        %v2053 = vpop.f32.mrf.mxu0
        %v2054 = vadd.f32 %v1849, %v2053
        %v2055 = vpop.f32.mrf.mxu0
        %v2056 = vpop.f32.mrf.mxu0
        %v2057 = vadd.f32 %v1849, %v2056
        %v2058 = vpop.f32.mrf.mxu0
        %2059 = vdwg.mxu0
        %2060 = vmatprep.subr.bf16.mxu0 0
        %2061 = vmatpush1.bf16.msra.mxu0 %v1970
        %2062 = vmatprep.subr.bf16.mxu0 0
        %2063 = vmatpush1.bf16.msra.mxu0 %v1969
        %2064 = vmatprep.subr.bf16.mxu0 0
        %2065 = vmatpush1.bf16.msra.mxu0 %v1968
        %2066 = vmatprep.subr.bf16.mxu0 0
        %2067 = vmatpush1.bf16.msra.mxu0 %v1967
        %2068 = vmatprep.subr.bf16.mxu0 0
        %2069 = vmatpush1.bf16.msra.mxu0 %v1966
        %2070 = vmatprep.subr.bf16.mxu0 0
        %2071 = vmatpush1.bf16.msra.mxu0 %v1965
        %2072 = vmatprep.subr.bf16.mxu0 0
        %2073 = vmatpush1.bf16.msra.mxu0 %v1964
        %2074 = vmatprep.subr.bf16.mxu0 0
        %2075 = vmatpush1.bf16.msra.mxu0 %v1963
        %2076 = vmatprep.subr.bf16.mxu0 0
        %2077 = vmatpush2.bf16.msra.mxu0 0
        %2078 = vmatprep.subr.bf16.mxu0 0
        %2079 = vmatpush2.bf16.msra.mxu0 0
        %2080 = vmatprep.subr.bf16.mxu0 0
        %2081 = vmatpush2.bf16.msra.mxu0 0
        %2082 = vmatprep.subr.bf16.mxu0 0
        %2083 = vmatpush2.bf16.msra.mxu0 0
        %2084 = vmatprep.subr.bf16.mxu0 0
        %2085 = vmatpush2.bf16.msra.mxu0 0
        %2086 = vmatprep.subr.bf16.mxu0 0
        %2087 = vmatpush2.bf16.msra.mxu0 0
        %2088 = vmatprep.subr.bf16.mxu0 0
        %2089 = vmatpush2.bf16.msra.mxu0 0
        %2090 = vmatprep.subr.bf16.mxu0 0
        %2091 = vmatpush2.bf16.msra.mxu0 0
        %2092 = vmatprep.mubr.bf16.mxu0 0
        %2093 = vmatmul.mubr.bf16.gmra.mxu0 %v1790
        %v2094 = vpop.f32.mrf.mxu0
        %v2095 = vadd.f32 %v2030, %v2094
        %v2096 = vpop.f32.mrf.mxu0
        %v2097 = vpop.f32.mrf.mxu0
        %v2098 = vadd.f32 %v2033, %v2097
        %v2099 = vpop.f32.mrf.mxu0
        %2100 = vmatprep.mubr.bf16.mxu0 0
        %2101 = vmatmul.mubr.bf16.gmra.mxu0 %v1791
        %v2102 = vpop.f32.mrf.mxu0
        %v2103 = vadd.f32 %v2038, %v2102
        %v2104 = vpop.f32.mrf.mxu0
        %v2105 = vpop.f32.mrf.mxu0
        %v2106 = vadd.f32 %v2041, %v2105
        %v2107 = vpop.f32.mrf.mxu0
        %2108 = vmatprep.mubr.bf16.mxu0 0
        %2109 = vmatmul.mubr.bf16.gmra.mxu0 %v1792
        %v2110 = vpop.f32.mrf.mxu0
        %v2111 = vadd.f32 %v2046, %v2110
        %v2112 = vpop.f32.mrf.mxu0
        %v2113 = vpop.f32.mrf.mxu0
        %v2114 = vadd.f32 %v2049, %v2113
        %v2115 = vpop.f32.mrf.mxu0
        %2116 = vmatprep.mubr.bf16.mxu0 0
        %2117 = vmatmul.mubr.bf16.gmra.mxu0 %v1793
        %v2118 = vpop.f32.mrf.mxu0
        %v2119 = vadd.f32 %v2054, %v2118
        %v2120 = vpop.f32.mrf.mxu0
        %v2121 = vpop.f32.mrf.mxu0
        %v2122 = vadd.f32 %v2057, %v2121
        %v2123 = vpop.f32.mrf.mxu0
        %2124 = vdwg.mxu0
        %v2125 = vmax.f32 %v2095, 0.0
        %v2126 = vmax.f32 %v2098, 0.0
        %v2127 = vmax.f32 %v2103, 0.0
        %v2128 = vmax.f32 %v2106, 0.0
        %v2129 = vmax.f32 %v2111, 0.0
        %v2130 = vmax.f32 %v2114, 0.0
        %v2131 = vmax.f32 %v2119, 0.0
        %v2132 = vmax.f32 %v2122, 0.0
        %2133 = vst [vmem:[#allocation2 + $0x20] sm:$0xff] %v2125
        %2134 = vst [vmem:[#allocation2 + $0x28] sm:$0xff] %v2126
        %2135 = vst [vmem:[#allocation2 + $0x50] sm:$0xff] %v2127
        %2136 = vst [vmem:[#allocation2 + $0x58] sm:$0xff] %v2128
        %2137 = vst [vmem:[#allocation2 + $0x80] sm:$0xff] %v2129
        %2138 = vst [vmem:[#allocation2 + $0x88] sm:$0xff] %v2130
        %2139 = vst [vmem:[#allocation2 + $0xb0] sm:$0xff] %v2131
        %2140 = vst [vmem:[#allocation2 + $0xb8] sm:$0xff] %v2132
        %v2141 = vld [vmem:[#allocation2] sm:$0xff]
        %v2142 = vld [vmem:[#allocation2 + $0x8] sm:$0xff]
        %v2143 = vld [vmem:[#allocation2 + $0x30] sm:$0xff]
        %v2144 = vld [vmem:[#allocation2 + $0x38] sm:$0xff]
        %v2145 = vld [vmem:[#allocation2 + $0x60] sm:$0xff]
        %v2146 = vld [vmem:[#allocation2 + $0x68] sm:$0xff]
        %v2147 = vld [vmem:[#allocation2 + $0x90] sm:$0xff]
        %v2148 = vld [vmem:[#allocation2 + $0x98] sm:$0xff]
        %v2149 = vpack.c.bf16 %v2142, %v2141
        %v2150 = vpack.c.bf16 %v2144, %v2143
        %v2151 = vpack.c.bf16 %v2146, %v2145
        %v2152 = vpack.c.bf16 %v2148, %v2147
        %v2153 = vld [vmem:[#allocation2 + $0x10] sm:$0xff]
        %v2154 = vld [vmem:[#allocation2 + $0x18] sm:$0xff]
        %v2155 = vld [vmem:[#allocation2 + $0x40] sm:$0xff]
        %v2156 = vld [vmem:[#allocation2 + $0x48] sm:$0xff]
        %v2157 = vld [vmem:[#allocation2 + $0x70] sm:$0xff]
        %v2158 = vld [vmem:[#allocation2 + $0x78] sm:$0xff]
        %v2159 = vld [vmem:[#allocation2 + $0xa0] sm:$0xff]
        %v2160 = vld [vmem:[#allocation2 + $0xa8] sm:$0xff]
        %v2161 = vpack.c.bf16 %v2154, %v2153
        %v2162 = vpack.c.bf16 %v2156, %v2155
        %v2163 = vpack.c.bf16 %v2158, %v2157
        %v2164 = vpack.c.bf16 %v2160, %v2159
        %v2165 = vld [vmem:[#allocation2 + $0x20] sm:$0xff]
        %v2166 = vld [vmem:[#allocation2 + $0x28] sm:$0xff]
        %v2167 = vld [vmem:[#allocation2 + $0x50] sm:$0xff]
        %v2168 = vld [vmem:[#allocation2 + $0x58] sm:$0xff]
        %v2169 = vld [vmem:[#allocation2 + $0x80] sm:$0xff]
        %v2170 = vld [vmem:[#allocation2 + $0x88] sm:$0xff]
        %v2171 = vld [vmem:[#allocation2 + $0xb0] sm:$0xff]
        %v2172 = vld [vmem:[#allocation2 + $0xb8] sm:$0xff]
        %v2173 = vpack.c.bf16 %v2166, %v2165
        %v2174 = vpack.c.bf16 %v2168, %v2167
        %v2175 = vpack.c.bf16 %v2170, %v2169
        %v2176 = vpack.c.bf16 %v2172, %v2171
        %s2177 = scalar_lea.vmem [#allocation3], 960
        %v2178 = vld [vmem:[%s2177] sm:$0xf]
        %v2179 = vld [vmem:[%s2177 + $0x4] sm:$0xf]
        %v2180 = vld [vmem:[%s2177 + $0x8] sm:$0xf]
        %v2181 = vld [vmem:[%s2177 + $0xc] sm:$0xf]
        %v2182 = vld [vmem:[%s2177 + $0x10] sm:$0xf]
        %v2183 = vld [vmem:[%s2177 + $0x14] sm:$0xf]
        %v2184 = vld [vmem:[%s2177 + $0x18] sm:$0xf]
        %v2185 = vld [vmem:[%s2177 + $0x1c] sm:$0xf]
        %v2186 = vld [vmem:[%s2177 + $0x20] sm:$0xf]
        %v2187 = vld [vmem:[%s2177 + $0x24] sm:$0xf]
        %v2188 = vld [vmem:[%s2177 + $0x28] sm:$0xf]
        %v2189 = vld [vmem:[%s2177 + $0x2c] sm:$0xf]
        %v2190 = vld [vmem:[%s2177 + $0x30] sm:$0xf]
        %v2191 = vld [vmem:[%s2177 + $0x34] sm:$0xf]
        %v2192 = vld [vmem:[%s2177 + $0x38] sm:$0xf]
        %v2193 = vld [vmem:[%s2177 + $0x3c] sm:$0xf]
        %v2194 = vld [vmem:[%s2177 + $0x40] sm:$0xf]
        %v2195 = vld [vmem:[%s2177 + $0x44] sm:$0xf]
        %v2196 = vld [vmem:[%s2177 + $0x48] sm:$0xf]
        %v2197 = vld [vmem:[%s2177 + $0x4c] sm:$0xf]
        %v2198 = vld [vmem:[%s2177 + $0x50] sm:$0xf]
        %v2199 = vld [vmem:[%s2177 + $0x54] sm:$0xf]
        %v2200 = vld [vmem:[%s2177 + $0x58] sm:$0xf]
        %v2201 = vld [vmem:[%s2177 + $0x5c] sm:$0xf]
        %v2202 = vld [vmem:[%s2177 + $0x60] sm:$0xf]
        %v2203 = vld [vmem:[%s2177 + $0x64] sm:$0xf]
        %v2204 = vld [vmem:[%s2177 + $0x68] sm:$0xf]
        %v2205 = vld [vmem:[%s2177 + $0x6c] sm:$0xf]
        %v2206 = vld [vmem:[%s2177 + $0x70] sm:$0xf]
        %v2207 = vld [vmem:[%s2177 + $0x74] sm:$0xf]
        %v2208 = vld [vmem:[%s2177 + $0x78] sm:$0xf]
        %v2209 = vld [vmem:[%s2177 + $0x7c] sm:$0xf]
        %v2210 = vld [vmem:[%s2177 + $0x80] sm:$0xf]
        %v2211 = vld [vmem:[%s2177 + $0x84] sm:$0xf]
        %v2212 = vld [vmem:[%s2177 + $0x88] sm:$0xf]
        %v2213 = vld [vmem:[%s2177 + $0x8c] sm:$0xf]
        %v2214 = vld [vmem:[%s2177 + $0x90] sm:$0xf]
        %v2215 = vld [vmem:[%s2177 + $0x94] sm:$0xf]
        %v2216 = vld [vmem:[%s2177 + $0x98] sm:$0xf]
        %v2217 = vld [vmem:[%s2177 + $0x9c] sm:$0xf]
        %v2218 = vld [vmem:[%s2177 + $0xa0] sm:$0xf]
        %v2219 = vld [vmem:[%s2177 + $0xa4] sm:$0xf]
        %v2220 = vld [vmem:[%s2177 + $0xa8] sm:$0xf]
        %v2221 = vld [vmem:[%s2177 + $0xac] sm:$0xf]
        %v2222 = vld [vmem:[%s2177 + $0xb0] sm:$0xf]
        %v2223 = vld [vmem:[%s2177 + $0xb4] sm:$0xf]
        %v2224 = vld [vmem:[%s2177 + $0xb8] sm:$0xf]
        %v2225 = vld [vmem:[%s2177 + $0xbc] sm:$0xf]
        %s2226 = scalar_lea.vmem %s2, 5
        %v2227 = vld [vmem:[%s2226] sm:$0x1]
        %v2229 = vlaneseq
        %v2230 = vshrl.u32 %v2229, 7
        %v2231 = vsub.s32 0, %v2230
        %v2232 = vrot.slane %v2227, %v2231
        %v2282 = vunpack.c.l.b16 %v2178
        %v2283 = vunpack.c.l.b16 %v2179
        %v2284 = vunpack.c.l.b16 %v2180
        %v2285 = vunpack.c.l.b16 %v2181
        %v2286 = vunpack.c.l.b16 %v2182
        %v2287 = vunpack.c.l.b16 %v2183
        %v2288 = vunpack.c.l.b16 %v2184
        %v2289 = vunpack.c.l.b16 %v2185
        %v2290 = vunpack.c.l.b16 %v2186
        %v2291 = vunpack.c.l.b16 %v2187
        %v2292 = vunpack.c.l.b16 %v2188
        %v2293 = vunpack.c.l.b16 %v2189
        %v2294 = vunpack.c.l.b16 %v2190
        %v2295 = vunpack.c.l.b16 %v2191
        %v2296 = vunpack.c.l.b16 %v2192
        %v2297 = vunpack.c.l.b16 %v2193
        %v2298 = vunpack.c.l.b16 %v2194
        %v2299 = vunpack.c.l.b16 %v2195
        %v2300 = vunpack.c.l.b16 %v2196
        %v2301 = vunpack.c.l.b16 %v2197
        %v2302 = vunpack.c.l.b16 %v2198
        %v2303 = vunpack.c.l.b16 %v2199
        %v2304 = vunpack.c.l.b16 %v2200
        %v2305 = vunpack.c.l.b16 %v2201
        %v2306 = vunpack.c.l.b16 %v2202
        %v2307 = vunpack.c.l.b16 %v2203
        %v2308 = vunpack.c.l.b16 %v2204
        %v2309 = vunpack.c.l.b16 %v2205
        %v2310 = vunpack.c.l.b16 %v2206
        %v2311 = vunpack.c.l.b16 %v2207
        %v2312 = vunpack.c.l.b16 %v2208
        %v2313 = vunpack.c.l.b16 %v2209
        %v2314 = vunpack.c.l.b16 %v2210
        %v2315 = vunpack.c.l.b16 %v2211
        %v2316 = vunpack.c.l.b16 %v2212
        %v2317 = vunpack.c.l.b16 %v2213
        %v2318 = vunpack.c.l.b16 %v2214
        %v2319 = vunpack.c.l.b16 %v2215
        %v2320 = vunpack.c.l.b16 %v2216
        %v2321 = vunpack.c.l.b16 %v2217
        %v2322 = vunpack.c.l.b16 %v2218
        %v2323 = vunpack.c.l.b16 %v2219
        %v2324 = vunpack.c.l.b16 %v2220
        %v2325 = vunpack.c.l.b16 %v2221
        %v2326 = vunpack.c.l.b16 %v2222
        %v2327 = vunpack.c.l.b16 %v2223
        %v2328 = vunpack.c.l.b16 %v2224
        %v2329 = vunpack.c.l.b16 %v2225
        %v2330 = vpack.c.b16 %v2283, %v2282
        %v2331 = vpack.c.b16 %v2285, %v2284
        %v2332 = vpack.c.b16 %v2287, %v2286
        %v2333 = vpack.c.b16 %v2289, %v2288
        %v2334 = vpack.c.b16 %v2291, %v2290
        %v2335 = vpack.c.b16 %v2293, %v2292
        %v2336 = vpack.c.b16 %v2295, %v2294
        %v2337 = vpack.c.b16 %v2297, %v2296
        %v2338 = vpack.c.b16 %v2299, %v2298
        %v2339 = vpack.c.b16 %v2301, %v2300
        %v2340 = vpack.c.b16 %v2303, %v2302
        %v2341 = vpack.c.b16 %v2305, %v2304
        %v2342 = vpack.c.b16 %v2307, %v2306
        %v2343 = vpack.c.b16 %v2309, %v2308
        %v2344 = vpack.c.b16 %v2311, %v2310
        %v2345 = vpack.c.b16 %v2313, %v2312
        %v2346 = vpack.c.b16 %v2315, %v2314
        %v2347 = vpack.c.b16 %v2317, %v2316
        %v2348 = vpack.c.b16 %v2319, %v2318
        %v2349 = vpack.c.b16 %v2321, %v2320
        %v2350 = vpack.c.b16 %v2323, %v2322
        %v2351 = vpack.c.b16 %v2325, %v2324
        %v2352 = vpack.c.b16 %v2327, %v2326
        %v2353 = vpack.c.b16 %v2329, %v2328
        %2378 = vmatprep.subr.bf16.mxu0 0
        %2379 = vmatpush1.bf16.msra.mxu0 %v2337
        %2380 = vmatprep.subr.bf16.mxu0 0
        %2381 = vmatpush1.bf16.msra.mxu0 %v2336
        %2382 = vmatprep.subr.bf16.mxu0 0
        %2383 = vmatpush1.bf16.msra.mxu0 %v2335
        %2384 = vmatprep.subr.bf16.mxu0 0
        %2385 = vmatpush1.bf16.msra.mxu0 %v2334
        %2386 = vmatprep.subr.bf16.mxu0 0
        %2387 = vmatpush1.bf16.msra.mxu0 %v2333
        %2388 = vmatprep.subr.bf16.mxu0 0
        %2389 = vmatpush1.bf16.msra.mxu0 %v2332
        %2390 = vmatprep.subr.bf16.mxu0 0
        %2391 = vmatpush1.bf16.msra.mxu0 %v2331
        %2392 = vmatprep.subr.bf16.mxu0 0
        %2393 = vmatpush1.bf16.msra.mxu0 %v2330
        %2394 = vmatprep.subr.bf16.mxu0 0
        %2395 = vmatpush2.bf16.msra.mxu0 %v2345
        %2396 = vmatprep.subr.bf16.mxu0 0
        %2397 = vmatpush2.bf16.msra.mxu0 %v2344
        %2398 = vmatprep.subr.bf16.mxu0 0
        %2399 = vmatpush2.bf16.msra.mxu0 %v2343
        %2400 = vmatprep.subr.bf16.mxu0 0
        %2401 = vmatpush2.bf16.msra.mxu0 %v2342
        %2402 = vmatprep.subr.bf16.mxu0 0
        %2403 = vmatpush2.bf16.msra.mxu0 %v2341
        %2404 = vmatprep.subr.bf16.mxu0 0
        %2405 = vmatpush2.bf16.msra.mxu0 %v2340
        %2406 = vmatprep.subr.bf16.mxu0 0
        %2407 = vmatpush2.bf16.msra.mxu0 %v2339
        %2408 = vmatprep.subr.bf16.mxu0 0
        %2409 = vmatpush2.bf16.msra.mxu0 %v2338
        %2410 = vmatprep.mubr.bf16.mxu0 %v2161
        %2411 = vmatmul.mubr.bf16.gmra.mxu0 %v2149
        %v2412 = vpop.f32.mrf.mxu0
        %v2413 = vadd.f32 %v2232, %v2412
        %v2414 = vpop.f32.mrf.mxu0
        %v2415 = vpop.f32.mrf.mxu0
        %v2416 = vadd.f32 %v2232, %v2415
        %v2417 = vpop.f32.mrf.mxu0
        %2418 = vmatprep.mubr.bf16.mxu0 %v2162
        %2419 = vmatmul.mubr.bf16.gmra.mxu0 %v2150
        %v2420 = vpop.f32.mrf.mxu0
        %v2421 = vadd.f32 %v2232, %v2420
        %v2422 = vpop.f32.mrf.mxu0
        %v2423 = vpop.f32.mrf.mxu0
        %v2424 = vadd.f32 %v2232, %v2423
        %v2425 = vpop.f32.mrf.mxu0
        %2426 = vmatprep.mubr.bf16.mxu0 %v2163
        %2427 = vmatmul.mubr.bf16.gmra.mxu0 %v2151
        %v2428 = vpop.f32.mrf.mxu0
        %v2429 = vadd.f32 %v2232, %v2428
        %v2430 = vpop.f32.mrf.mxu0
        %v2431 = vpop.f32.mrf.mxu0
        %v2432 = vadd.f32 %v2232, %v2431
        %v2433 = vpop.f32.mrf.mxu0
        %2434 = vmatprep.mubr.bf16.mxu0 %v2164
        %2435 = vmatmul.mubr.bf16.gmra.mxu0 %v2152
        %v2436 = vpop.f32.mrf.mxu0
        %v2437 = vadd.f32 %v2232, %v2436
        %v2438 = vpop.f32.mrf.mxu0
        %v2439 = vpop.f32.mrf.mxu0
        %v2440 = vadd.f32 %v2232, %v2439
        %v2441 = vpop.f32.mrf.mxu0
        %2442 = vdwg.mxu0
        %2443 = vmatprep.subr.bf16.mxu0 0
        %2444 = vmatpush1.bf16.msra.mxu0 %v2353
        %2445 = vmatprep.subr.bf16.mxu0 0
        %2446 = vmatpush1.bf16.msra.mxu0 %v2352
        %2447 = vmatprep.subr.bf16.mxu0 0
        %2448 = vmatpush1.bf16.msra.mxu0 %v2351
        %2449 = vmatprep.subr.bf16.mxu0 0
        %2450 = vmatpush1.bf16.msra.mxu0 %v2350
        %2451 = vmatprep.subr.bf16.mxu0 0
        %2452 = vmatpush1.bf16.msra.mxu0 %v2349
        %2453 = vmatprep.subr.bf16.mxu0 0
        %2454 = vmatpush1.bf16.msra.mxu0 %v2348
        %2455 = vmatprep.subr.bf16.mxu0 0
        %2456 = vmatpush1.bf16.msra.mxu0 %v2347
        %2457 = vmatprep.subr.bf16.mxu0 0
        %2458 = vmatpush1.bf16.msra.mxu0 %v2346
        %2459 = vmatprep.subr.bf16.mxu0 0
        %2460 = vmatpush2.bf16.msra.mxu0 0
        %2461 = vmatprep.subr.bf16.mxu0 0
        %2462 = vmatpush2.bf16.msra.mxu0 0
        %2463 = vmatprep.subr.bf16.mxu0 0
        %2464 = vmatpush2.bf16.msra.mxu0 0
        %2465 = vmatprep.subr.bf16.mxu0 0
        %2466 = vmatpush2.bf16.msra.mxu0 0
        %2467 = vmatprep.subr.bf16.mxu0 0
        %2468 = vmatpush2.bf16.msra.mxu0 0
        %2469 = vmatprep.subr.bf16.mxu0 0
        %2470 = vmatpush2.bf16.msra.mxu0 0
        %2471 = vmatprep.subr.bf16.mxu0 0
        %2472 = vmatpush2.bf16.msra.mxu0 0
        %2473 = vmatprep.subr.bf16.mxu0 0
        %2474 = vmatpush2.bf16.msra.mxu0 0
        %2475 = vmatprep.mubr.bf16.mxu0 0
        %2476 = vmatmul.mubr.bf16.gmra.mxu0 %v2173
        %v2477 = vpop.f32.mrf.mxu0
        %v2478 = vadd.f32 %v2413, %v2477
        %v2479 = vpop.f32.mrf.mxu0
        %v2480 = vpop.f32.mrf.mxu0
        %v2481 = vadd.f32 %v2416, %v2480
        %v2482 = vpop.f32.mrf.mxu0
        %2483 = vmatprep.mubr.bf16.mxu0 0
        %2484 = vmatmul.mubr.bf16.gmra.mxu0 %v2174
        %v2485 = vpop.f32.mrf.mxu0
        %v2486 = vadd.f32 %v2421, %v2485
        %v2487 = vpop.f32.mrf.mxu0
        %v2488 = vpop.f32.mrf.mxu0
        %v2489 = vadd.f32 %v2424, %v2488
        %v2490 = vpop.f32.mrf.mxu0
        %2491 = vmatprep.mubr.bf16.mxu0 0
        %2492 = vmatmul.mubr.bf16.gmra.mxu0 %v2175
        %v2493 = vpop.f32.mrf.mxu0
        %v2494 = vadd.f32 %v2429, %v2493
        %v2495 = vpop.f32.mrf.mxu0
        %v2496 = vpop.f32.mrf.mxu0
        %v2497 = vadd.f32 %v2432, %v2496
        %v2498 = vpop.f32.mrf.mxu0
        %2499 = vmatprep.mubr.bf16.mxu0 0
        %2500 = vmatmul.mubr.bf16.gmra.mxu0 %v2176
        %v2501 = vpop.f32.mrf.mxu0
        %v2502 = vadd.f32 %v2437, %v2501
        %v2503 = vpop.f32.mrf.mxu0
        %v2504 = vpop.f32.mrf.mxu0
        %v2505 = vadd.f32 %v2440, %v2504
        %v2506 = vpop.f32.mrf.mxu0
        %2507 = vdwg.mxu0
        %v2508 = vmax.f32 %v2478, 0.0
        %v2509 = vmax.f32 %v2481, 0.0
        %v2510 = vmax.f32 %v2486, 0.0
        %v2511 = vmax.f32 %v2489, 0.0
        %v2512 = vmax.f32 %v2494, 0.0
        %v2513 = vmax.f32 %v2497, 0.0
        %v2514 = vmax.f32 %v2502, 0.0
        %v2515 = vmax.f32 %v2505, 0.0
        %2516 = vst [vmem:[#allocation2 + $0x20] sm:$0xff] %v2508
        %2517 = vst [vmem:[#allocation2 + $0x28] sm:$0xff] %v2509
        %2518 = vst [vmem:[#allocation2 + $0x50] sm:$0xff] %v2510
        %2519 = vst [vmem:[#allocation2 + $0x58] sm:$0xff] %v2511
        %2520 = vst [vmem:[#allocation2 + $0x80] sm:$0xff] %v2512
        %2521 = vst [vmem:[#allocation2 + $0x88] sm:$0xff] %v2513
        %2522 = vst [vmem:[#allocation2 + $0xb0] sm:$0xff] %v2514
        %2523 = vst [vmem:[#allocation2 + $0xb8] sm:$0xff] %v2515
        %v2524 = vld [vmem:[#allocation2 + $0x20] sm:$0xff]
        %v2525 = vld [vmem:[#allocation2 + $0x28] sm:$0xff]
        %v2526 = vld [vmem:[#allocation2 + $0x50] sm:$0xff]
        %v2527 = vld [vmem:[#allocation2 + $0x58] sm:$0xff]
        %v2528 = vld [vmem:[#allocation2 + $0x80] sm:$0xff]
        %v2529 = vld [vmem:[#allocation2 + $0x88] sm:$0xff]
        %v2530 = vld [vmem:[#allocation2 + $0xb0] sm:$0xff]
        %v2531 = vld [vmem:[#allocation2 + $0xb8] sm:$0xff]
        %v2532 = vld [vmem:[%s187] sm:$0xff]
        %v2533 = vld [vmem:[%s187 + $0x8] sm:$0xff]
        %v2534 = vld [vmem:[%s187 + $0x10] sm:$0xff]
        %v2535 = vld [vmem:[%s187 + $0x18] sm:$0xff]
        %v2536 = vld [vmem:[%s187 + $0x20] sm:$0xff]
        %v2537 = vld [vmem:[%s187 + $0x28] sm:$0xff]
        %v2538 = vld [vmem:[%s187 + $0x30] sm:$0xff]
        %v2539 = vld [vmem:[%s187 + $0x38] sm:$0xff]
        %v2540 = vsel %vm215, %v2532, 0.0
        %v2541 = vsel %vm215, %v2533, 0.0
        %v2542 = vsel %vm215, %v2534, 0.0
        %v2543 = vsel %vm215, %v2535, 0.0
        %v2544 = vsel %vm215, %v2536, 0.0
        %v2545 = vsel %vm215, %v2537, 0.0
        %v2546 = vsel %vm215, %v2538, 0.0
        %v2547 = vsel %vm215, %v2539, 0.0
        %v2548 = vadd.f32 %v2524, %v2540
        %v2549 = vadd.f32 %v2525, %v2541
        %v2550 = vadd.f32 %v2526, %v2542
        %v2551 = vadd.f32 %v2527, %v2543
        %v2552 = vadd.f32 %v2528, %v2544
        %v2553 = vadd.f32 %v2529, %v2545
        %v2554 = vadd.f32 %v2530, %v2546
        %v2555 = vadd.f32 %v2531, %v2547
        %2556 = vst [vmem:[%s181] sm:$0xff] %v2548
        %2557 = vst [vmem:[%s181 + $0x8] sm:$0xff] %v2549
        %2558 = vst [vmem:[%s181 + $0x10] sm:$0xff] %v2550
        %2559 = vst [vmem:[%s181 + $0x18] sm:$0xff] %v2551
        %2560 = vst [vmem:[%s181 + $0x20] sm:$0xff] %v2552
        %2561 = vst [vmem:[%s181 + $0x28] sm:$0xff] %v2553
        %2562 = vst [vmem:[%s181 + $0x30] sm:$0xff] %v2554
        %2563 = vst [vmem:[%s181 + $0x38] sm:$0xff] %v2555
        %s2564 = sand.u32 %s94, 1
        %s2565 = scalar_lea.sflag [#allocation5], %s2564
        %s2566 = sand.u32 %s94, 1
        %s2567 = smul.addr %s2566, 64
        %s2568 = scalar_lea.vmem [#allocation6], %s2567
        // Predicated region
        $region37: #{tpu_custom_call.1} parent=31 // pred_check
          %p2569 = pneg %p104
        $region38: #{tpu_custom_call.1} parent=31 // pred_check_branch
          %2571 = sbr.rel (%p2569) target = $region40
        $region39: #{tpu_custom_call.1} parent=31 // pred_region
          %s2572 = smul.u32 4, %s18
          %s2574 = ssub.s32 1024, 1024
          %2575 = vsyncadd %s2565, %s2574
          %s2576 = smul.addr %s2572, 2
          %s2577 = smul.addr %s2576, 128
          %s2578 = scalar_lea.hbm %s3, %s2577
          %s2579 = sshll.u32 %s2568, 4
          %s2580 = int_to_ptr.vmem [resolvable:$true] %s2579
          %2585 = dma.vmem_to_hbm [thread:$0]  %s2580, 1024, %s2578, %s2565, 128, 128, 8
        $region40: #{tpu_custom_call.1} parent=31 // pred_fallthru
          _
      $region32: #{tpu_custom_call.1} parent=5 // pred_fallthru
        _
      %p2586 = scmp.le.s32.totalorder 2, %s13
      // Predicated region
      $region41: #{tpu_custom_call.1} parent=5 // pred_check
        %p2587 = pneg %p2586
      $region42: #{tpu_custom_call.1} parent=5 // pred_check_branch
        %2589 = sbr.rel (%p2587) target = $region44
      $region43: #{tpu_custom_call.1} parent=5 // pred_region
        %s2590 = ssub.s32 %s13, 2
        // Predicated region
        $region45: #{tpu_custom_call.1} parent=43 // pred_check
          %p2591 = pneg %p110
        $region46: #{tpu_custom_call.1} parent=43 // pred_check_branch
          %2593 = sbr.rel (%p2591) target = $region48
        $region47: #{tpu_custom_call.1} parent=43 // pred_region
          %s2594 = sand.u32 %s95, 1
          %s2595 = scalar_lea.sflag [#allocation5], %s2594
          %s2596 = sand.u32 %s95, 1
          %s2597 = smul.addr %s2596, 64
          %s2598 = scalar_lea.vmem [#allocation6], %s2597
          %2599 = dma.done %s2595, 1024
        $region48: #{tpu_custom_call.1} parent=43 // pred_fallthru
          _
      $region44: #{tpu_custom_call.1} parent=5 // pred_fallthru
        _
    $region6: #{tpu_custom_call.1} parent=1 // loop_footer
      %s17 = sadd.s32 1, %s13
    $region7: #{tpu_custom_call.1} parent=1 // loop_footer_branch
      %12 = sbr.rel target = $region3
    $region8: #{tpu_custom_call.1} parent=1 // loop_exit
      _
    %2600 = vsyncpa [#allocation4], 1
    %s2601 = scalar_lea.sflag [#allocation4], 1
    %2602 = vsyncpa %s2601, 1
    %2603 = vsyncpa [#allocation5], 1
    %s2604 = scalar_lea.sflag [#allocation5], 1
    %2605 = vsyncpa %s2604, 1

</llo_original>
